<compile_context>
chip_gen: v6e
topology: v6e:2x2x1
jax: 0.10.0
libtpu: 0.0.40
codegen_flags: <defaults>
</compile_context>

<pallas_src>
import functools
import numpy as np

import jax
import jax.numpy as jnp
from jax.experimental import pallas as pl
from jax.experimental.pallas import tpu as pltpu


def _lstm_head_kernel(xproj_ref, len_ref,
                      whh_ref,
                      w1a_ref, w1b_ref, b1_ref, w2_ref, b2_ref,
                      out_ref,
                      h_ref, c_ref, mx_ref, sm_ref,
                      *, hidden_size, tt, t_out):
    """One grid step == TT LSTM timesteps. Final grid step runs pooling + MLP head."""
    bt = pl.program_id(0)
    H = hidden_size

    @pl.when(bt == 0)
    def _init():
        h_ref[...] = jnp.zeros_like(h_ref)
        c_ref[...] = jnp.zeros_like(c_ref)
        mx_ref[...] = jnp.full(mx_ref.shape, -jnp.inf, dtype=mx_ref.dtype)
        sm_ref[...] = jnp.zeros_like(sm_ref)

    lengths = len_ref[...]                 # (B, 1) int32, resident (constant index map)
    whh = whh_ref[...]                     # (H, 4H), resident
    t0 = bt * tt

    def step(s, carry):
        h, c, mx, sm = carry
        t = t0 + s                         # global timestep
        # x one-hot => input projection is a pre-gathered row of W_ih^T (+ biases),
        # so a single MXU matmul per timestep remains.
        gates = xproj_ref[s] + jnp.dot(h.astype(whh.dtype), whh,
                                       preferred_element_type=jnp.float32)
        i_g = jax.nn.sigmoid(gates[:, 0 * H:1 * H])
        f_g = jax.nn.sigmoid(gates[:, 1 * H:2 * H])
        g_g = jnp.tanh(gates[:, 2 * H:3 * H])
        o_g = jax.nn.sigmoid(gates[:, 3 * H:4 * H])

        c_new = f_g * c + i_g * g_g
        h_new = o_g * jnp.tanh(c_new)

        valid = t < lengths                # (B, 1) bool; packed-seq semantics
        h = jnp.where(valid, h_new, h)     # state frozen past each sequence length
        c = jnp.where(valid, c_new, c)

        out_t = jnp.where(valid, h_new, 0.0)   # pad_packed_sequence: zeros when padded
        # Guard against time-padding to a multiple of TT: steps t >= t_out must not
        # inject extra zero rows into the running max (matters for rows with
        # length == T_out, which see no zeros in PyTorch).
        in_range = t < t_out
        mx = jnp.where(in_range, jnp.maximum(mx, out_t), mx)
        sm = sm + out_t                    # out_t == 0 for every t >= length (incl. t >= t_out)
        return h, c, mx, sm

    carry = (h_ref[...], c_ref[...], mx_ref[...], sm_ref[...])
    h, c, mx, sm = jax.lax.fori_loop(0, tt, step, carry, unroll=True)
    h_ref[...] = h
    c_ref[...] = c
    mx_ref[...] = mx
    sm_ref[...] = sm

    @pl.when(bt == pl.num_programs(0) - 1)
    def _finalize():
        mean = sm * (1.0 / t_out)          # PyTorch mean divides by padded length T_out
        # cat([max, mean]) @ W1^T == max @ W1a + mean @ W1b  (no lane-axis concat)
        hid = (jnp.dot(mx, w1a_ref[...], preferred_element_type=jnp.float32)
               + jnp.dot(mean, w1b_ref[...], preferred_element_type=jnp.float32)
               + b1_ref[...])
        hid = jnp.maximum(hid, 0.0)        # ReLU
        logits = jnp.dot(hid, w2_ref[...], preferred_element_type=jnp.float32) + b2_ref[...]
        out_ref[...] = logits.astype(out_ref.dtype)


def lstm_forward(tokens, lengths, params, *, tt=8, matmul_dtype=jnp.float32):
    """tokens: (B, T) int32, lengths: python/np list of ints (like PyTorch CPU lengths).

    matmul_dtype=jnp.bfloat16 enables the MXU-native fast path (v6e/v7x) for the
    recurrent matmul (gate math stays f32); default f32 matches PyTorch numerics.
    """
    wih, whh, b_ih, b_hh, w1, b1, w2, b2 = (params[k] for k in
        ("w_ih", "w_hh", "b_ih", "b_hh", "fc1_w", "fc1_b", "fc2_w", "fc2_b"))
    H = whh.shape[1]
    C = w2.shape[0]
    B0 = tokens.shape[0]
    assert (4 * H) % 128 == 0, "4*hidden_size must be a multiple of 128 for lane tiling"

    lengths_np = np.asarray(lengths, dtype=np.int32)
    assert lengths_np.min() >= 1, "pack_padded_sequence requires lengths >= 1"
    T_out = int(lengths_np.max())              # pad_packed_sequence pads to max(lengths)
    T_pad = ((T_out + tt - 1) // tt) * tt
    n_blocks = T_pad // tt

    # --- pad batch to a multiple of 8 (sublane tile); dummy rows get length 1 ---
    B = ((B0 + 7) // 8) * 8
    if B != B0:
        tokens = jnp.pad(tokens, ((0, B - B0), (0, 0)))
        lengths_np = np.pad(lengths_np, (0, B - B0), constant_values=1)

    # --- input projection: one-hot(x) @ W_ih^T + (b_ih + b_hh) is a row gather ---
    wih_t = jnp.transpose(wih)                                 # (I, 4H)
    bias = (b_ih + b_hh)[None, None, :]                        # (1, 1, 4H)
    x_proj = jnp.take(wih_t, tokens[:, :T_out], axis=0)        # (B, T_out, 4H)
    x_proj = jnp.transpose(x_proj, (1, 0, 2)) + bias           # (T_out, B, 4H) time-major
    if T_pad != T_out:
        x_proj = jnp.pad(x_proj, ((0, T_pad - T_out), (0, 0), (0, 0)))
    x_proj = x_proj.astype(jnp.float32)

    lengths_dev = jnp.asarray(lengths_np)[:, None]             # (B, 1) int32

    # pre-transpose weights for (B,K)@(K,N) matmuls
    whh_t = jnp.transpose(whh).astype(matmul_dtype)            # (H, 4H)
    w1_t = jnp.transpose(w1)                                   # (2H, H)
    w1a = w1_t[:H, :]                                          # (H, H) acts on out_max
    w1b = w1_t[H:, :]                                          # (H, H) acts on out_mean
    b1_r = b1[None, :]                                         # (1, H)
    w2_t = jnp.transpose(w2)                                   # (H, C)
    b2_r = b2[None, :]                                         # (1, C)

    full = lambda shape: pl.BlockSpec(shape, lambda t: (0,) * len(shape))
    kernel = functools.partial(_lstm_head_kernel, hidden_size=H, tt=tt, t_out=T_out)

    out = pl.pallas_call(
        kernel,
        out_shape=jax.ShapeDtypeStruct((B, C), jnp.float32),
        grid_spec=pltpu.PrefetchScalarGridSpec(
            num_scalar_prefetch=0,
            grid=(n_blocks,),
            in_specs=[
                pl.BlockSpec((tt, B, 4 * H), lambda t: (t, 0, 0)),  # x_proj, TT timesteps
                full((B, 1)),                                       # lengths (resident)
                full((H, 4 * H)),                                   # W_hh^T
                full((H, H)),                                       # W1a
                full((H, H)),                                       # W1b
                full((1, H)),                                       # b1
                full((H, C)),                                       # W2^T
                full((1, C)),                                       # b2
            ],
            out_specs=pl.BlockSpec((B, C), lambda t: (0, 0)),
            scratch_shapes=[
                pltpu.VMEM((B, H), jnp.float32),   # h
                pltpu.VMEM((B, H), jnp.float32),   # c
                pltpu.VMEM((B, H), jnp.float32),   # running max
                pltpu.VMEM((B, H), jnp.float32),   # running sum
            ],
        ),
        compiler_params=pltpu.CompilerParams(
            dimension_semantics=("arbitrary",),    # sequential recurrence over time blocks
        ),
    )(x_proj, lengths_dev, whh_t, w1a, w1b, b1_r, w2_t, b2_r)
    return out[:B0]


def ref_forward(tokens, lengths, params):
    """Pure-JAX reference mirroring the PyTorch module semantics."""
    wih, whh, b_ih, b_hh, w1, b1, w2, b2 = (params[k] for k in
        ("w_ih", "w_hh", "b_ih", "b_hh", "fc1_w", "fc1_b", "fc2_w", "fc2_b"))
    I = wih.shape[1]
    H = whh.shape[1]
    B = tokens.shape[0]
    lengths = np.asarray(lengths, dtype=np.int32)
    T_out = int(lengths.max())

    x = jnp.eye(I, dtype=jnp.float32)[tokens[:, :T_out]]             # (B, T, I)
    mask = jnp.asarray((np.arange(T_out)[None, :] < lengths[:, None]).astype(np.float32))

    def step(carry, xt_mt):
        h, c = carry
        xt, mt = xt_mt                                               # (B, I), (B,)
        gates = xt @ wih.T + h @ whh.T + b_ih + b_hh
        i_g = jax.nn.sigmoid(gates[:, 0 * H:1 * H])
        f_g = jax.nn.sigmoid(gates[:, 1 * H:2 * H])
        g_g = jnp.tanh(gates[:, 2 * H:3 * H])
        o_g = jax.nn.sigmoid(gates[:, 3 * H:4 * H])
        c_new = f_g * c + i_g * g_g
        h_new = o_g * jnp.tanh(c_new)
        m = mt[:, None]
        h = jnp.where(m > 0, h_new, h)
        c = jnp.where(m > 0, c_new, c)
        return (h, c), h_new * m

    h0 = jnp.zeros((B, H), jnp.float32)
    c0 = jnp.zeros((B, H), jnp.float32)
    _, outs = jax.lax.scan(step, (h0, c0),
                           (jnp.transpose(x, (1, 0, 2)), jnp.transpose(mask)))
    outs = jnp.transpose(outs, (1, 0, 2))                            # (B, T, H)
    out_max = jnp.max(outs, axis=1)
    out_mean = jnp.mean(outs, axis=1)
    feat = jnp.concatenate([out_max, out_mean], axis=1)
    hid = jnp.maximum(feat @ w1.T + b1, 0.0)
    return hid @ w2.T + b2


def init_params(key, input_size, hidden_size, num_class):
    ks = jax.random.split(key, 8)
    s = 1.0 / np.sqrt(hidden_size)
    u = lambda k, shape: jax.random.uniform(k, shape, jnp.float32, -s, s)
    return {
        "w_ih": u(ks[0], (4 * hidden_size, input_size)),
        "w_hh": u(ks[1], (4 * hidden_size, hidden_size)),
        "b_ih": u(ks[2], (4 * hidden_size,)),
        "b_hh": u(ks[3], (4 * hidden_size,)),
        "fc1_w": u(ks[4], (hidden_size, 2 * hidden_size)),
        "fc1_b": u(ks[5], (hidden_size,)),
        "fc2_w": u(ks[6], (num_class, hidden_size)),
        "fc2_b": u(ks[7], (num_class,)),
    }


if __name__ == "__main__":
    INPUT_SIZE = 16    # vocab size (one-hot embedding dim)
    HIDDEN = 32
    NUM_CLASS = 8
    B, T = 8, 8

    key = jax.random.PRNGKey(0)
    k_tok, k_par = jax.random.split(key)
    tokens = jax.random.randint(k_tok, (B, T), 0, INPUT_SIZE, dtype=jnp.int32)
    lengths = [8, 5, 3, 6, 8, 1, 7, 4]     # max(lengths) == T_out == 8; variable padding
    params = init_params(k_par, INPUT_SIZE, HIDDEN, NUM_CLASS)

    out = lstm_forward(tokens, lengths, params, tt=8)
    out = jax.block_until_ready(out)

    ref = jax.block_until_ready(ref_forward(tokens, lengths, params))
    assert out.shape == (B, NUM_CLASS)
    assert jnp.allclose(out, ref, atol=1e-5, rtol=1e-5), (out, ref)

    print("KERNEL_OK")
</pallas_src>

<mosaic_0001>
module attributes {stable_mosaic.version = 11 : i64} {
  func.func @_lstm_head_kernel(%arg0: i32, %arg1: memref<8x8x128xf32, #tpu.memory_space<vmem>>, %arg2: memref<8x1xi32, #tpu.memory_space<vmem>>, %arg3: memref<32x128xf32, #tpu.memory_space<vmem>>, %arg4: memref<32x32xf32, #tpu.memory_space<vmem>>, %arg5: memref<32x32xf32, #tpu.memory_space<vmem>>, %arg6: memref<1x32xf32, #tpu.memory_space<vmem>>, %arg7: memref<32x8xf32, #tpu.memory_space<vmem>>, %arg8: memref<1x8xf32, #tpu.memory_space<vmem>>, %arg9: memref<8x8xf32, #tpu.memory_space<vmem>>, %arg10: memref<8x32xf32, #tpu.memory_space<vmem>>, %arg11: memref<8x32xf32, #tpu.memory_space<vmem>>, %arg12: memref<8x32xf32, #tpu.memory_space<vmem>>, %arg13: memref<8x32xf32, #tpu.memory_space<vmem>>) attributes {dimension_semantics = [#tpu.dimension_semantics<arbitrary>], iteration_bounds = array<i64: 1>, scalar_prefetch = 0 : i64, scratch_operands = 4 : i64, tpu.core_type = #tpu.core_type<tc>, window_params = [{transform_indices = @transform_0, window_bounds = array<i64: 8, 8, 128>}, {pipeline_mode = #tpu.pipeline_mode<synchronous>, transform_indices = @transform_1, window_bounds = array<i64: 8, 1>}, {pipeline_mode = #tpu.pipeline_mode<synchronous>, transform_indices = @transform_2, window_bounds = array<i64: 32, 128>}, {pipeline_mode = #tpu.pipeline_mode<synchronous>, transform_indices = @transform_3, window_bounds = array<i64: 32, 32>}, {pipeline_mode = #tpu.pipeline_mode<synchronous>, transform_indices = @transform_4, window_bounds = array<i64: 32, 32>}, {pipeline_mode = #tpu.pipeline_mode<synchronous>, transform_indices = @transform_5, window_bounds = array<i64: 1, 32>}, {pipeline_mode = #tpu.pipeline_mode<synchronous>, transform_indices = @transform_6, window_bounds = array<i64: 32, 8>}, {pipeline_mode = #tpu.pipeline_mode<synchronous>, transform_indices = @transform_7, window_bounds = array<i64: 1, 8>}, {pipeline_mode = #tpu.pipeline_mode<synchronous>, transform_indices = @transform_8, window_bounds = array<i64: 8, 8>}]} {
    %c0_i32 = arith.constant 0 : i32
    %0 = arith.cmpi eq, %arg0, %c0_i32 : i32
    %1 = arith.extui %0 : i1 to i32
    %c0_i32_0 = arith.constant 0 : i32
    %2 = arith.cmpi ne, %1, %c0_i32_0 : i32
    scf.if %2 {
      %cst_87 = arith.constant 0.000000e+00 : f32
      %393 = vector.broadcast %cst_87 : f32 to vector<8x32xf32>
      %c0_88 = arith.constant 0 : index
      %c0_89 = arith.constant 0 : index
      %394 = vector.load %arg10[%c0_88, %c0_89] : memref<8x32xf32, #tpu.memory_space<vmem>>, vector<8x32xf32>
      tpu.vector_store %arg10[%c0_88, %c0_89], %393 {strides = array<i32>} : memref<8x32xf32, #tpu.memory_space<vmem>>, vector<8x32xf32>,
      %cst_90 = arith.constant 0.000000e+00 : f32
      %395 = vector.broadcast %cst_90 : f32 to vector<8x32xf32>
      %c0_91 = arith.constant 0 : index
      %c0_92 = arith.constant 0 : index
      %396 = vector.load %arg11[%c0_91, %c0_92] : memref<8x32xf32, #tpu.memory_space<vmem>>, vector<8x32xf32>
      tpu.vector_store %arg11[%c0_91, %c0_92], %395 {strides = array<i32>} : memref<8x32xf32, #tpu.memory_space<vmem>>, vector<8x32xf32>,
      %cst_93 = arith.constant 0xFF800000 : f32
      %397 = vector.broadcast %cst_93 : f32 to vector<8x32xf32>
      %c0_94 = arith.constant 0 : index
      %c0_95 = arith.constant 0 : index
      %398 = vector.load %arg12[%c0_94, %c0_95] : memref<8x32xf32, #tpu.memory_space<vmem>>, vector<8x32xf32>
      tpu.vector_store %arg12[%c0_94, %c0_95], %397 {strides = array<i32>} : memref<8x32xf32, #tpu.memory_space<vmem>>, vector<8x32xf32>,
      %cst_96 = arith.constant 0.000000e+00 : f32
      %399 = vector.broadcast %cst_96 : f32 to vector<8x32xf32>
      %c0_97 = arith.constant 0 : index
      %c0_98 = arith.constant 0 : index
      %400 = vector.load %arg13[%c0_97, %c0_98] : memref<8x32xf32, #tpu.memory_space<vmem>>, vector<8x32xf32>
      tpu.vector_store %arg13[%c0_97, %c0_98], %399 {strides = array<i32>} : memref<8x32xf32, #tpu.memory_space<vmem>>, vector<8x32xf32>,
    } else {
    }
    %c0 = arith.constant 0 : index
    %c0_1 = arith.constant 0 : index
    %3 = vector.load %arg2[%c0, %c0_1] : memref<8x1xi32, #tpu.memory_space<vmem>>, vector<8x1xi32>
    %c0_2 = arith.constant 0 : index
    %c0_3 = arith.constant 0 : index
    %4 = vector.load %arg3[%c0_2, %c0_3] : memref<32x128xf32, #tpu.memory_space<vmem>>, vector<32x128xf32>
    %c8_i32 = arith.constant 8 : i32
    %5 = arith.muli %arg0, %c8_i32 : i32
    %c0_4 = arith.constant 0 : index
    %c0_5 = arith.constant 0 : index
    %6 = vector.load %arg10[%c0_4, %c0_5] : memref<8x32xf32, #tpu.memory_space<vmem>>, vector<8x32xf32>
    %c0_6 = arith.constant 0 : index
    %c0_7 = arith.constant 0 : index
    %7 = vector.load %arg11[%c0_6, %c0_7] : memref<8x32xf32, #tpu.memory_space<vmem>>, vector<8x32xf32>
    %c0_8 = arith.constant 0 : index
    %c0_9 = arith.constant 0 : index
    %8 = vector.load %arg12[%c0_8, %c0_9] : memref<8x32xf32, #tpu.memory_space<vmem>>, vector<8x32xf32>
    %c0_10 = arith.constant 0 : index
    %c0_11 = arith.constant 0 : index
    %9 = vector.load %arg13[%c0_10, %c0_11] : memref<8x32xf32, #tpu.memory_space<vmem>>, vector<8x32xf32>
    %c0_i32_12 = arith.constant 0 : i32
    %10 = arith.addi %5, %c0_i32_12 : i32
    %11 = arith.index_cast %c0_i32_12 : i32 to index
    %c0_13 = arith.constant 0 : index
    %c0_14 = arith.constant 0 : index
    %12 = vector.load %arg1[%11, %c0_13, %c0_14] : memref<8x8x128xf32, #tpu.memory_space<vmem>>, vector<1x8x128xf32>
    %13 = vector.shape_cast %12 : vector<1x8x128xf32> to vector<8x128xf32>
    %cst = arith.constant dense<0.000000e+00> : vector<8x128xf32>
    %14 = tpu.matmul %6, %4, %cst {dimension_numbers = #tpu.dot_dimension_numbers<[1], [0], [0], [1], [0, 0, 1, 1], [], []>} : vector<8x32xf32>, vector<32x128xf32>, vector<8x128xf32> -> vector<8x128xf32>
    %15 = arith.addf %13, %14 : vector<8x128xf32>
    %16 = vector.extract_strided_slice %15 {offsets = [0, 0], sizes = [8, 32], strides = [1, 1]} : vector<8x128xf32> to vector<8x32xf32>
    %17 = arith.negf %16 : vector<8x32xf32>
    %18 = math.exp %17 : vector<8x32xf32>
    %cst_15 = arith.constant 1.000000e+00 : f32
    %19 = vector.broadcast %cst_15 : f32 to vector<8x32xf32>
    %20 = arith.addf %19, %18 : vector<8x32xf32>
    %21 = arith.divf %19, %20 : vector<8x32xf32>
    %22 = vector.extract_strided_slice %15 {offsets = [0, 32], sizes = [8, 32], strides = [1, 1]} : vector<8x128xf32> to vector<8x32xf32>
    %23 = arith.negf %22 : vector<8x32xf32>
    %24 = math.exp %23 : vector<8x32xf32>
    %cst_16 = arith.constant 1.000000e+00 : f32
    %25 = vector.broadcast %cst_16 : f32 to vector<8x32xf32>
    %26 = arith.addf %25, %24 : vector<8x32xf32>
    %27 = arith.divf %25, %26 : vector<8x32xf32>
    %28 = vector.extract_strided_slice %15 {offsets = [0, 64], sizes = [8, 32], strides = [1, 1]} : vector<8x128xf32> to vector<8x32xf32>
    %29 = math.tanh %28 : vector<8x32xf32>
    %30 = vector.extract_strided_slice %15 {offsets = [0, 96], sizes = [8, 32], strides = [1, 1]} : vector<8x128xf32> to vector<8x32xf32>
    %31 = arith.negf %30 : vector<8x32xf32>
    %32 = math.exp %31 : vector<8x32xf32>
    %cst_17 = arith.constant 1.000000e+00 : f32
    %33 = vector.broadcast %cst_17 : f32 to vector<8x32xf32>
    %34 = arith.addf %33, %32 : vector<8x32xf32>
    %35 = arith.divf %33, %34 : vector<8x32xf32>
    %36 = arith.mulf %27, %7 : vector<8x32xf32>
    %37 = arith.mulf %21, %29 : vector<8x32xf32>
    %38 = arith.addf %36, %37 : vector<8x32xf32>
    %39 = math.tanh %38 : vector<8x32xf32>
    %40 = arith.mulf %35, %39 : vector<8x32xf32>
    %41 = vector.broadcast %10 : i32 to vector<8x1xi32>
    %42 = arith.cmpi slt, %41, %3 : vector<8x1xi32>
    %43 = vector.shape_cast %42 : vector<8x1xi1> to vector<8x1xi1>
    %44 = vector.broadcast %43 : vector<8x1xi1> to vector<8x32xi1>
    %45 = arith.select %44, %40, %6 : vector<8x32xi1>, vector<8x32xf32>
    %46 = vector.shape_cast %42 : vector<8x1xi1> to vector<8x1xi1>
    %47 = vector.broadcast %46 : vector<8x1xi1> to vector<8x32xi1>
    %48 = arith.select %47, %38, %7 : vector<8x32xi1>, vector<8x32xf32>
    %cst_18 = arith.constant 0.000000e+00 : f32
    %49 = vector.shape_cast %42 : vector<8x1xi1> to vector<8x1xi1>
    %50 = vector.broadcast %49 : vector<8x1xi1> to vector<8x32xi1>
    %51 = vector.broadcast %cst_18 : f32 to vector<8x32xf32>
    %52 = arith.select %50, %40, %51 : vector<8x32xi1>, vector<8x32xf32>
    %c8_i32_19 = arith.constant 8 : i32
    %53 = arith.cmpi slt, %10, %c8_i32_19 : i32
    %54 = arith.maximumf %8, %52 : vector<8x32xf32>
    %55 = arith.select %53, %54, %8 : vector<8x32xf32>
    %56 = arith.addf %9, %52 : vector<8x32xf32>
    %c1_i32 = arith.constant 1 : i32
    %57 = arith.addi %5, %c1_i32 : i32
    %58 = arith.index_cast %c1_i32 : i32 to index
    %c0_20 = arith.constant 0 : index
    %c0_21 = arith.constant 0 : index
    %59 = vector.load %arg1[%58, %c0_20, %c0_21] : memref<8x8x128xf32, #tpu.memory_space<vmem>>, vector<1x8x128xf32>
    %60 = vector.shape_cast %59 : vector<1x8x128xf32> to vector<8x128xf32>
    %cst_22 = arith.constant dense<0.000000e+00> : vector<8x128xf32>
    %61 = tpu.matmul %45, %4, %cst_22 {dimension_numbers = #tpu.dot_dimension_numbers<[1], [0], [0], [1], [0, 0, 1, 1], [], []>} : vector<8x32xf32>, vector<32x128xf32>, vector<8x128xf32> -> vector<8x128xf32>
    %62 = arith.addf %60, %61 : vector<8x128xf32>
    %63 = vector.extract_strided_slice %62 {offsets = [0, 0], sizes = [8, 32], strides = [1, 1]} : vector<8x128xf32> to vector<8x32xf32>
    %64 = arith.negf %63 : vector<8x32xf32>
    %65 = math.exp %64 : vector<8x32xf32>
    %cst_23 = arith.constant 1.000000e+00 : f32
    %66 = vector.broadcast %cst_23 : f32 to vector<8x32xf32>
    %67 = arith.addf %66, %65 : vector<8x32xf32>
    %68 = arith.divf %66, %67 : vector<8x32xf32>
    %69 = vector.extract_strided_slice %62 {offsets = [0, 32], sizes = [8, 32], strides = [1, 1]} : vector<8x128xf32> to vector<8x32xf32>
    %70 = arith.negf %69 : vector<8x32xf32>
    %71 = math.exp %70 : vector<8x32xf32>
    %cst_24 = arith.constant 1.000000e+00 : f32
    %72 = vector.broadcast %cst_24 : f32 to vector<8x32xf32>
    %73 = arith.addf %72, %71 : vector<8x32xf32>
    %74 = arith.divf %72, %73 : vector<8x32xf32>
    %75 = vector.extract_strided_slice %62 {offsets = [0, 64], sizes = [8, 32], strides = [1, 1]} : vector<8x128xf32> to vector<8x32xf32>
    %76 = math.tanh %75 : vector<8x32xf32>
    %77 = vector.extract_strided_slice %62 {offsets = [0, 96], sizes = [8, 32], strides = [1, 1]} : vector<8x128xf32> to vector<8x32xf32>
    %78 = arith.negf %77 : vector<8x32xf32>
    %79 = math.exp %78 : vector<8x32xf32>
    %cst_25 = arith.constant 1.000000e+00 : f32
    %80 = vector.broadcast %cst_25 : f32 to vector<8x32xf32>
    %81 = arith.addf %80, %79 : vector<8x32xf32>
    %82 = arith.divf %80, %81 : vector<8x32xf32>
    %83 = arith.mulf %74, %48 : vector<8x32xf32>
    %84 = arith.mulf %68, %76 : vector<8x32xf32>
    %85 = arith.addf %83, %84 : vector<8x32xf32>
    %86 = math.tanh %85 : vector<8x32xf32>
    %87 = arith.mulf %82, %86 : vector<8x32xf32>
    %88 = vector.broadcast %57 : i32 to vector<8x1xi32>
    %89 = arith.cmpi slt, %88, %3 : vector<8x1xi32>
    %90 = vector.shape_cast %89 : vector<8x1xi1> to vector<8x1xi1>
    %91 = vector.broadcast %90 : vector<8x1xi1> to vector<8x32xi1>
    %92 = arith.select %91, %87, %45 : vector<8x32xi1>, vector<8x32xf32>
    %93 = vector.shape_cast %89 : vector<8x1xi1> to vector<8x1xi1>
    %94 = vector.broadcast %93 : vector<8x1xi1> to vector<8x32xi1>
    %95 = arith.select %94, %85, %48 : vector<8x32xi1>, vector<8x32xf32>
    %cst_26 = arith.constant 0.000000e+00 : f32
    %96 = vector.shape_cast %89 : vector<8x1xi1> to vector<8x1xi1>
    %97 = vector.broadcast %96 : vector<8x1xi1> to vector<8x32xi1>
    %98 = vector.broadcast %cst_26 : f32 to vector<8x32xf32>
    %99 = arith.select %97, %87, %98 : vector<8x32xi1>, vector<8x32xf32>
    %c8_i32_27 = arith.constant 8 : i32
    %100 = arith.cmpi slt, %57, %c8_i32_27 : i32
    %101 = arith.maximumf %55, %99 : vector<8x32xf32>
    %102 = arith.select %100, %101, %55 : vector<8x32xf32>
    %103 = arith.addf %56, %99 : vector<8x32xf32>
    %c2_i32 = arith.constant 2 : i32
    %104 = arith.addi %5, %c2_i32 : i32
    %105 = arith.index_cast %c2_i32 : i32 to index
    %c0_28 = arith.constant 0 : index
    %c0_29 = arith.constant 0 : index
    %106 = vector.load %arg1[%105, %c0_28, %c0_29] : memref<8x8x128xf32, #tpu.memory_space<vmem>>, vector<1x8x128xf32>
    %107 = vector.shape_cast %106 : vector<1x8x128xf32> to vector<8x128xf32>
    %cst_30 = arith.constant dense<0.000000e+00> : vector<8x128xf32>
    %108 = tpu.matmul %92, %4, %cst_30 {dimension_numbers = #tpu.dot_dimension_numbers<[1], [0], [0], [1], [0, 0, 1, 1], [], []>} : vector<8x32xf32>, vector<32x128xf32>, vector<8x128xf32> -> vector<8x128xf32>
    %109 = arith.addf %107, %108 : vector<8x128xf32>
    %110 = vector.extract_strided_slice %109 {offsets = [0, 0], sizes = [8, 32], strides = [1, 1]} : vector<8x128xf32> to vector<8x32xf32>
    %111 = arith.negf %110 : vector<8x32xf32>
    %112 = math.exp %111 : vector<8x32xf32>
    %cst_31 = arith.constant 1.000000e+00 : f32
    %113 = vector.broadcast %cst_31 : f32 to vector<8x32xf32>
    %114 = arith.addf %113, %112 : vector<8x32xf32>
    %115 = arith.divf %113, %114 : vector<8x32xf32>
    %116 = vector.extract_strided_slice %109 {offsets = [0, 32], sizes = [8, 32], strides = [1, 1]} : vector<8x128xf32> to vector<8x32xf32>
    %117 = arith.negf %116 : vector<8x32xf32>
    %118 = math.exp %117 : vector<8x32xf32>
    %cst_32 = arith.constant 1.000000e+00 : f32
    %119 = vector.broadcast %cst_32 : f32 to vector<8x32xf32>
    %120 = arith.addf %119, %118 : vector<8x32xf32>
    %121 = arith.divf %119, %120 : vector<8x32xf32>
    %122 = vector.extract_strided_slice %109 {offsets = [0, 64], sizes = [8, 32], strides = [1, 1]} : vector<8x128xf32> to vector<8x32xf32>
    %123 = math.tanh %122 : vector<8x32xf32>
    %124 = vector.extract_strided_slice %109 {offsets = [0, 96], sizes = [8, 32], strides = [1, 1]} : vector<8x128xf32> to vector<8x32xf32>
    %125 = arith.negf %124 : vector<8x32xf32>
    %126 = math.exp %125 : vector<8x32xf32>
    %cst_33 = arith.constant 1.000000e+00 : f32
    %127 = vector.broadcast %cst_33 : f32 to vector<8x32xf32>
    %128 = arith.addf %127, %126 : vector<8x32xf32>
    %129 = arith.divf %127, %128 : vector<8x32xf32>
    %130 = arith.mulf %121, %95 : vector<8x32xf32>
    %131 = arith.mulf %115, %123 : vector<8x32xf32>
    %132 = arith.addf %130, %131 : vector<8x32xf32>
    %133 = math.tanh %132 : vector<8x32xf32>
    %134 = arith.mulf %129, %133 : vector<8x32xf32>
    %135 = vector.broadcast %104 : i32 to vector<8x1xi32>
    %136 = arith.cmpi slt, %135, %3 : vector<8x1xi32>
    %137 = vector.shape_cast %136 : vector<8x1xi1> to vector<8x1xi1>
    %138 = vector.broadcast %137 : vector<8x1xi1> to vector<8x32xi1>
    %139 = arith.select %138, %134, %92 : vector<8x32xi1>, vector<8x32xf32>
    %140 = vector.shape_cast %136 : vector<8x1xi1> to vector<8x1xi1>
    %141 = vector.broadcast %140 : vector<8x1xi1> to vector<8x32xi1>
    %142 = arith.select %141, %132, %95 : vector<8x32xi1>, vector<8x32xf32>
    %cst_34 = arith.constant 0.000000e+00 : f32
    %143 = vector.shape_cast %136 : vector<8x1xi1> to vector<8x1xi1>
    %144 = vector.broadcast %143 : vector<8x1xi1> to vector<8x32xi1>
    %145 = vector.broadcast %cst_34 : f32 to vector<8x32xf32>
    %146 = arith.select %144, %134, %145 : vector<8x32xi1>, vector<8x32xf32>
    %c8_i32_35 = arith.constant 8 : i32
    %147 = arith.cmpi slt, %104, %c8_i32_35 : i32
    %148 = arith.maximumf %102, %146 : vector<8x32xf32>
    %149 = arith.select %147, %148, %102 : vector<8x32xf32>
    %150 = arith.addf %103, %146 : vector<8x32xf32>
    %c3_i32 = arith.constant 3 : i32
    %151 = arith.addi %5, %c3_i32 : i32
    %152 = arith.index_cast %c3_i32 : i32 to index
    %c0_36 = arith.constant 0 : index
    %c0_37 = arith.constant 0 : index
    %153 = vector.load %arg1[%152, %c0_36, %c0_37] : memref<8x8x128xf32, #tpu.memory_space<vmem>>, vector<1x8x128xf32>
    %154 = vector.shape_cast %153 : vector<1x8x128xf32> to vector<8x128xf32>
    %cst_38 = arith.constant dense<0.000000e+00> : vector<8x128xf32>
    %155 = tpu.matmul %139, %4, %cst_38 {dimension_numbers = #tpu.dot_dimension_numbers<[1], [0], [0], [1], [0, 0, 1, 1], [], []>} : vector<8x32xf32>, vector<32x128xf32>, vector<8x128xf32> -> vector<8x128xf32>
    %156 = arith.addf %154, %155 : vector<8x128xf32>
    %157 = vector.extract_strided_slice %156 {offsets = [0, 0], sizes = [8, 32], strides = [1, 1]} : vector<8x128xf32> to vector<8x32xf32>
    %158 = arith.negf %157 : vector<8x32xf32>
    %159 = math.exp %158 : vector<8x32xf32>
    %cst_39 = arith.constant 1.000000e+00 : f32
    %160 = vector.broadcast %cst_39 : f32 to vector<8x32xf32>
    %161 = arith.addf %160, %159 : vector<8x32xf32>
    %162 = arith.divf %160, %161 : vector<8x32xf32>
    %163 = vector.extract_strided_slice %156 {offsets = [0, 32], sizes = [8, 32], strides = [1, 1]} : vector<8x128xf32> to vector<8x32xf32>
    %164 = arith.negf %163 : vector<8x32xf32>
    %165 = math.exp %164 : vector<8x32xf32>
    %cst_40 = arith.constant 1.000000e+00 : f32
    %166 = vector.broadcast %cst_40 : f32 to vector<8x32xf32>
    %167 = arith.addf %166, %165 : vector<8x32xf32>
    %168 = arith.divf %166, %167 : vector<8x32xf32>
    %169 = vector.extract_strided_slice %156 {offsets = [0, 64], sizes = [8, 32], strides = [1, 1]} : vector<8x128xf32> to vector<8x32xf32>
    %170 = math.tanh %169 : vector<8x32xf32>
    %171 = vector.extract_strided_slice %156 {offsets = [0, 96], sizes = [8, 32], strides = [1, 1]} : vector<8x128xf32> to vector<8x32xf32>
    %172 = arith.negf %171 : vector<8x32xf32>
    %173 = math.exp %172 : vector<8x32xf32>
    %cst_41 = arith.constant 1.000000e+00 : f32
    %174 = vector.broadcast %cst_41 : f32 to vector<8x32xf32>
    %175 = arith.addf %174, %173 : vector<8x32xf32>
    %176 = arith.divf %174, %175 : vector<8x32xf32>
    %177 = arith.mulf %168, %142 : vector<8x32xf32>
    %178 = arith.mulf %162, %170 : vector<8x32xf32>
    %179 = arith.addf %177, %178 : vector<8x32xf32>
    %180 = math.tanh %179 : vector<8x32xf32>
    %181 = arith.mulf %176, %180 : vector<8x32xf32>
    %182 = vector.broadcast %151 : i32 to vector<8x1xi32>
    %183 = arith.cmpi slt, %182, %3 : vector<8x1xi32>
    %184 = vector.shape_cast %183 : vector<8x1xi1> to vector<8x1xi1>
    %185 = vector.broadcast %184 : vector<8x1xi1> to vector<8x32xi1>
    %186 = arith.select %185, %181, %139 : vector<8x32xi1>, vector<8x32xf32>
    %187 = vector.shape_cast %183 : vector<8x1xi1> to vector<8x1xi1>
    %188 = vector.broadcast %187 : vector<8x1xi1> to vector<8x32xi1>
    %189 = arith.select %188, %179, %142 : vector<8x32xi1>, vector<8x32xf32>
    %cst_42 = arith.constant 0.000000e+00 : f32
    %190 = vector.shape_cast %183 : vector<8x1xi1> to vector<8x1xi1>
    %191 = vector.broadcast %190 : vector<8x1xi1> to vector<8x32xi1>
    %192 = vector.broadcast %cst_42 : f32 to vector<8x32xf32>
    %193 = arith.select %191, %181, %192 : vector<8x32xi1>, vector<8x32xf32>
    %c8_i32_43 = arith.constant 8 : i32
    %194 = arith.cmpi slt, %151, %c8_i32_43 : i32
    %195 = arith.maximumf %149, %193 : vector<8x32xf32>
    %196 = arith.select %194, %195, %149 : vector<8x32xf32>
    %197 = arith.addf %150, %193 : vector<8x32xf32>
    %c4_i32 = arith.constant 4 : i32
    %198 = arith.addi %5, %c4_i32 : i32
    %199 = arith.index_cast %c4_i32 : i32 to index
    %c0_44 = arith.constant 0 : index
    %c0_45 = arith.constant 0 : index
    %200 = vector.load %arg1[%199, %c0_44, %c0_45] : memref<8x8x128xf32, #tpu.memory_space<vmem>>, vector<1x8x128xf32>
    %201 = vector.shape_cast %200 : vector<1x8x128xf32> to vector<8x128xf32>
    %cst_46 = arith.constant dense<0.000000e+00> : vector<8x128xf32>
    %202 = tpu.matmul %186, %4, %cst_46 {dimension_numbers = #tpu.dot_dimension_numbers<[1], [0], [0], [1], [0, 0, 1, 1], [], []>} : vector<8x32xf32>, vector<32x128xf32>, vector<8x128xf32> -> vector<8x128xf32>
    %203 = arith.addf %201, %202 : vector<8x128xf32>
    %204 = vector.extract_strided_slice %203 {offsets = [0, 0], sizes = [8, 32], strides = [1, 1]} : vector<8x128xf32> to vector<8x32xf32>
    %205 = arith.negf %204 : vector<8x32xf32>
    %206 = math.exp %205 : vector<8x32xf32>
    %cst_47 = arith.constant 1.000000e+00 : f32
    %207 = vector.broadcast %cst_47 : f32 to vector<8x32xf32>
    %208 = arith.addf %207, %206 : vector<8x32xf32>
    %209 = arith.divf %207, %208 : vector<8x32xf32>
    %210 = vector.extract_strided_slice %203 {offsets = [0, 32], sizes = [8, 32], strides = [1, 1]} : vector<8x128xf32> to vector<8x32xf32>
    %211 = arith.negf %210 : vector<8x32xf32>
    %212 = math.exp %211 : vector<8x32xf32>
    %cst_48 = arith.constant 1.000000e+00 : f32
    %213 = vector.broadcast %cst_48 : f32 to vector<8x32xf32>
    %214 = arith.addf %213, %212 : vector<8x32xf32>
    %215 = arith.divf %213, %214 : vector<8x32xf32>
    %216 = vector.extract_strided_slice %203 {offsets = [0, 64], sizes = [8, 32], strides = [1, 1]} : vector<8x128xf32> to vector<8x32xf32>
    %217 = math.tanh %216 : vector<8x32xf32>
    %218 = vector.extract_strided_slice %203 {offsets = [0, 96], sizes = [8, 32], strides = [1, 1]} : vector<8x128xf32> to vector<8x32xf32>
    %219 = arith.negf %218 : vector<8x32xf32>
    %220 = math.exp %219 : vector<8x32xf32>
    %cst_49 = arith.constant 1.000000e+00 : f32
    %221 = vector.broadcast %cst_49 : f32 to vector<8x32xf32>
    %222 = arith.addf %221, %220 : vector<8x32xf32>
    %223 = arith.divf %221, %222 : vector<8x32xf32>
    %224 = arith.mulf %215, %189 : vector<8x32xf32>
    %225 = arith.mulf %209, %217 : vector<8x32xf32>
    %226 = arith.addf %224, %225 : vector<8x32xf32>
    %227 = math.tanh %226 : vector<8x32xf32>
    %228 = arith.mulf %223, %227 : vector<8x32xf32>
    %229 = vector.broadcast %198 : i32 to vector<8x1xi32>
    %230 = arith.cmpi slt, %229, %3 : vector<8x1xi32>
    %231 = vector.shape_cast %230 : vector<8x1xi1> to vector<8x1xi1>
    %232 = vector.broadcast %231 : vector<8x1xi1> to vector<8x32xi1>
    %233 = arith.select %232, %228, %186 : vector<8x32xi1>, vector<8x32xf32>
    %234 = vector.shape_cast %230 : vector<8x1xi1> to vector<8x1xi1>
    %235 = vector.broadcast %234 : vector<8x1xi1> to vector<8x32xi1>
    %236 = arith.select %235, %226, %189 : vector<8x32xi1>, vector<8x32xf32>
    %cst_50 = arith.constant 0.000000e+00 : f32
    %237 = vector.shape_cast %230 : vector<8x1xi1> to vector<8x1xi1>
    %238 = vector.broadcast %237 : vector<8x1xi1> to vector<8x32xi1>
    %239 = vector.broadcast %cst_50 : f32 to vector<8x32xf32>
    %240 = arith.select %238, %228, %239 : vector<8x32xi1>, vector<8x32xf32>
    %c8_i32_51 = arith.constant 8 : i32
    %241 = arith.cmpi slt, %198, %c8_i32_51 : i32
    %242 = arith.maximumf %196, %240 : vector<8x32xf32>
    %243 = arith.select %241, %242, %196 : vector<8x32xf32>
    %244 = arith.addf %197, %240 : vector<8x32xf32>
    %c5_i32 = arith.constant 5 : i32
    %245 = arith.addi %5, %c5_i32 : i32
    %246 = arith.index_cast %c5_i32 : i32 to index
    %c0_52 = arith.constant 0 : index
    %c0_53 = arith.constant 0 : index
    %247 = vector.load %arg1[%246, %c0_52, %c0_53] : memref<8x8x128xf32, #tpu.memory_space<vmem>>, vector<1x8x128xf32>
    %248 = vector.shape_cast %247 : vector<1x8x128xf32> to vector<8x128xf32>
    %cst_54 = arith.constant dense<0.000000e+00> : vector<8x128xf32>
    %249 = tpu.matmul %233, %4, %cst_54 {dimension_numbers = #tpu.dot_dimension_numbers<[1], [0], [0], [1], [0, 0, 1, 1], [], []>} : vector<8x32xf32>, vector<32x128xf32>, vector<8x128xf32> -> vector<8x128xf32>
    %250 = arith.addf %248, %249 : vector<8x128xf32>
    %251 = vector.extract_strided_slice %250 {offsets = [0, 0], sizes = [8, 32], strides = [1, 1]} : vector<8x128xf32> to vector<8x32xf32>
    %252 = arith.negf %251 : vector<8x32xf32>
    %253 = math.exp %252 : vector<8x32xf32>
    %cst_55 = arith.constant 1.000000e+00 : f32
    %254 = vector.broadcast %cst_55 : f32 to vector<8x32xf32>
    %255 = arith.addf %254, %253 : vector<8x32xf32>
    %256 = arith.divf %254, %255 : vector<8x32xf32>
    %257 = vector.extract_strided_slice %250 {offsets = [0, 32], sizes = [8, 32], strides = [1, 1]} : vector<8x128xf32> to vector<8x32xf32>
    %258 = arith.negf %257 : vector<8x32xf32>
    %259 = math.exp %258 : vector<8x32xf32>
    %cst_56 = arith.constant 1.000000e+00 : f32
    %260 = vector.broadcast %cst_56 : f32 to vector<8x32xf32>
    %261 = arith.addf %260, %259 : vector<8x32xf32>
    %262 = arith.divf %260, %261 : vector<8x32xf32>
    %263 = vector.extract_strided_slice %250 {offsets = [0, 64], sizes = [8, 32], strides = [1, 1]} : vector<8x128xf32> to vector<8x32xf32>
    %264 = math.tanh %263 : vector<8x32xf32>
    %265 = vector.extract_strided_slice %250 {offsets = [0, 96], sizes = [8, 32], strides = [1, 1]} : vector<8x128xf32> to vector<8x32xf32>
    %266 = arith.negf %265 : vector<8x32xf32>
    %267 = math.exp %266 : vector<8x32xf32>
    %cst_57 = arith.constant 1.000000e+00 : f32
    %268 = vector.broadcast %cst_57 : f32 to vector<8x32xf32>
    %269 = arith.addf %268, %267 : vector<8x32xf32>
    %270 = arith.divf %268, %269 : vector<8x32xf32>
    %271 = arith.mulf %262, %236 : vector<8x32xf32>
    %272 = arith.mulf %256, %264 : vector<8x32xf32>
    %273 = arith.addf %271, %272 : vector<8x32xf32>
    %274 = math.tanh %273 : vector<8x32xf32>
    %275 = arith.mulf %270, %274 : vector<8x32xf32>
    %276 = vector.broadcast %245 : i32 to vector<8x1xi32>
    %277 = arith.cmpi slt, %276, %3 : vector<8x1xi32>
    %278 = vector.shape_cast %277 : vector<8x1xi1> to vector<8x1xi1>
    %279 = vector.broadcast %278 : vector<8x1xi1> to vector<8x32xi1>
    %280 = arith.select %279, %275, %233 : vector<8x32xi1>, vector<8x32xf32>
    %281 = vector.shape_cast %277 : vector<8x1xi1> to vector<8x1xi1>
    %282 = vector.broadcast %281 : vector<8x1xi1> to vector<8x32xi1>
    %283 = arith.select %282, %273, %236 : vector<8x32xi1>, vector<8x32xf32>
    %cst_58 = arith.constant 0.000000e+00 : f32
    %284 = vector.shape_cast %277 : vector<8x1xi1> to vector<8x1xi1>
    %285 = vector.broadcast %284 : vector<8x1xi1> to vector<8x32xi1>
    %286 = vector.broadcast %cst_58 : f32 to vector<8x32xf32>
    %287 = arith.select %285, %275, %286 : vector<8x32xi1>, vector<8x32xf32>
    %c8_i32_59 = arith.constant 8 : i32
    %288 = arith.cmpi slt, %245, %c8_i32_59 : i32
    %289 = arith.maximumf %243, %287 : vector<8x32xf32>
    %290 = arith.select %288, %289, %243 : vector<8x32xf32>
    %291 = arith.addf %244, %287 : vector<8x32xf32>
    %c6_i32 = arith.constant 6 : i32
    %292 = arith.addi %5, %c6_i32 : i32
    %293 = arith.index_cast %c6_i32 : i32 to index
    %c0_60 = arith.constant 0 : index
    %c0_61 = arith.constant 0 : index
    %294 = vector.load %arg1[%293, %c0_60, %c0_61] : memref<8x8x128xf32, #tpu.memory_space<vmem>>, vector<1x8x128xf32>
    %295 = vector.shape_cast %294 : vector<1x8x128xf32> to vector<8x128xf32>
    %cst_62 = arith.constant dense<0.000000e+00> : vector<8x128xf32>
    %296 = tpu.matmul %280, %4, %cst_62 {dimension_numbers = #tpu.dot_dimension_numbers<[1], [0], [0], [1], [0, 0, 1, 1], [], []>} : vector<8x32xf32>, vector<32x128xf32>, vector<8x128xf32> -> vector<8x128xf32>
    %297 = arith.addf %295, %296 : vector<8x128xf32>
    %298 = vector.extract_strided_slice %297 {offsets = [0, 0], sizes = [8, 32], strides = [1, 1]} : vector<8x128xf32> to vector<8x32xf32>
    %299 = arith.negf %298 : vector<8x32xf32>
    %300 = math.exp %299 : vector<8x32xf32>
    %cst_63 = arith.constant 1.000000e+00 : f32
    %301 = vector.broadcast %cst_63 : f32 to vector<8x32xf32>
    %302 = arith.addf %301, %300 : vector<8x32xf32>
    %303 = arith.divf %301, %302 : vector<8x32xf32>
    %304 = vector.extract_strided_slice %297 {offsets = [0, 32], sizes = [8, 32], strides = [1, 1]} : vector<8x128xf32> to vector<8x32xf32>
    %305 = arith.negf %304 : vector<8x32xf32>
    %306 = math.exp %305 : vector<8x32xf32>
    %cst_64 = arith.constant 1.000000e+00 : f32
    %307 = vector.broadcast %cst_64 : f32 to vector<8x32xf32>
    %308 = arith.addf %307, %306 : vector<8x32xf32>
    %309 = arith.divf %307, %308 : vector<8x32xf32>
    %310 = vector.extract_strided_slice %297 {offsets = [0, 64], sizes = [8, 32], strides = [1, 1]} : vector<8x128xf32> to vector<8x32xf32>
    %311 = math.tanh %310 : vector<8x32xf32>
    %312 = vector.extract_strided_slice %297 {offsets = [0, 96], sizes = [8, 32], strides = [1, 1]} : vector<8x128xf32> to vector<8x32xf32>
    %313 = arith.negf %312 : vector<8x32xf32>
    %314 = math.exp %313 : vector<8x32xf32>
    %cst_65 = arith.constant 1.000000e+00 : f32
    %315 = vector.broadcast %cst_65 : f32 to vector<8x32xf32>
    %316 = arith.addf %315, %314 : vector<8x32xf32>
    %317 = arith.divf %315, %316 : vector<8x32xf32>
    %318 = arith.mulf %309, %283 : vector<8x32xf32>
    %319 = arith.mulf %303, %311 : vector<8x32xf32>
    %320 = arith.addf %318, %319 : vector<8x32xf32>
    %321 = math.tanh %320 : vector<8x32xf32>
    %322 = arith.mulf %317, %321 : vector<8x32xf32>
    %323 = vector.broadcast %292 : i32 to vector<8x1xi32>
    %324 = arith.cmpi slt, %323, %3 : vector<8x1xi32>
    %325 = vector.shape_cast %324 : vector<8x1xi1> to vector<8x1xi1>
    %326 = vector.broadcast %325 : vector<8x1xi1> to vector<8x32xi1>
    %327 = arith.select %326, %322, %280 : vector<8x32xi1>, vector<8x32xf32>
    %328 = vector.shape_cast %324 : vector<8x1xi1> to vector<8x1xi1>
    %329 = vector.broadcast %328 : vector<8x1xi1> to vector<8x32xi1>
    %330 = arith.select %329, %320, %283 : vector<8x32xi1>, vector<8x32xf32>
    %cst_66 = arith.constant 0.000000e+00 : f32
    %331 = vector.shape_cast %324 : vector<8x1xi1> to vector<8x1xi1>
    %332 = vector.broadcast %331 : vector<8x1xi1> to vector<8x32xi1>
    %333 = vector.broadcast %cst_66 : f32 to vector<8x32xf32>
    %334 = arith.select %332, %322, %333 : vector<8x32xi1>, vector<8x32xf32>
    %c8_i32_67 = arith.constant 8 : i32
    %335 = arith.cmpi slt, %292, %c8_i32_67 : i32
    %336 = arith.maximumf %290, %334 : vector<8x32xf32>
    %337 = arith.select %335, %336, %290 : vector<8x32xf32>
    %338 = arith.addf %291, %334 : vector<8x32xf32>
    %c7_i32 = arith.constant 7 : i32
    %339 = arith.addi %5, %c7_i32 : i32
    %340 = arith.index_cast %c7_i32 : i32 to index
    %c0_68 = arith.constant 0 : index
    %c0_69 = arith.constant 0 : index
    %341 = vector.load %arg1[%340, %c0_68, %c0_69] : memref<8x8x128xf32, #tpu.memory_space<vmem>>, vector<1x8x128xf32>
    %342 = vector.shape_cast %341 : vector<1x8x128xf32> to vector<8x128xf32>
    %cst_70 = arith.constant dense<0.000000e+00> : vector<8x128xf32>
    %343 = tpu.matmul %327, %4, %cst_70 {dimension_numbers = #tpu.dot_dimension_numbers<[1], [0], [0], [1], [0, 0, 1, 1], [], []>} : vector<8x32xf32>, vector<32x128xf32>, vector<8x128xf32> -> vector<8x128xf32>
    %344 = arith.addf %342, %343 : vector<8x128xf32>
    %345 = vector.extract_strided_slice %344 {offsets = [0, 0], sizes = [8, 32], strides = [1, 1]} : vector<8x128xf32> to vector<8x32xf32>
    %346 = arith.negf %345 : vector<8x32xf32>
    %347 = math.exp %346 : vector<8x32xf32>
    %cst_71 = arith.constant 1.000000e+00 : f32
    %348 = vector.broadcast %cst_71 : f32 to vector<8x32xf32>
    %349 = arith.addf %348, %347 : vector<8x32xf32>
    %350 = arith.divf %348, %349 : vector<8x32xf32>
    %351 = vector.extract_strided_slice %344 {offsets = [0, 32], sizes = [8, 32], strides = [1, 1]} : vector<8x128xf32> to vector<8x32xf32>
    %352 = arith.negf %351 : vector<8x32xf32>
    %353 = math.exp %352 : vector<8x32xf32>
    %cst_72 = arith.constant 1.000000e+00 : f32
    %354 = vector.broadcast %cst_72 : f32 to vector<8x32xf32>
    %355 = arith.addf %354, %353 : vector<8x32xf32>
    %356 = arith.divf %354, %355 : vector<8x32xf32>
    %357 = vector.extract_strided_slice %344 {offsets = [0, 64], sizes = [8, 32], strides = [1, 1]} : vector<8x128xf32> to vector<8x32xf32>
    %358 = math.tanh %357 : vector<8x32xf32>
    %359 = vector.extract_strided_slice %344 {offsets = [0, 96], sizes = [8, 32], strides = [1, 1]} : vector<8x128xf32> to vector<8x32xf32>
    %360 = arith.negf %359 : vector<8x32xf32>
    %361 = math.exp %360 : vector<8x32xf32>
    %cst_73 = arith.constant 1.000000e+00 : f32
    %362 = vector.broadcast %cst_73 : f32 to vector<8x32xf32>
    %363 = arith.addf %362, %361 : vector<8x32xf32>
    %364 = arith.divf %362, %363 : vector<8x32xf32>
    %365 = arith.mulf %356, %330 : vector<8x32xf32>
    %366 = arith.mulf %350, %358 : vector<8x32xf32>
    %367 = arith.addf %365, %366 : vector<8x32xf32>
    %368 = math.tanh %367 : vector<8x32xf32>
    %369 = arith.mulf %364, %368 : vector<8x32xf32>
    %370 = vector.broadcast %339 : i32 to vector<8x1xi32>
    %371 = arith.cmpi slt, %370, %3 : vector<8x1xi32>
    %372 = vector.shape_cast %371 : vector<8x1xi1> to vector<8x1xi1>
    %373 = vector.broadcast %372 : vector<8x1xi1> to vector<8x32xi1>
    %374 = arith.select %373, %369, %327 : vector<8x32xi1>, vector<8x32xf32>
    %375 = vector.shape_cast %371 : vector<8x1xi1> to vector<8x1xi1>
    %376 = vector.broadcast %375 : vector<8x1xi1> to vector<8x32xi1>
    %377 = arith.select %376, %367, %330 : vector<8x32xi1>, vector<8x32xf32>
    %cst_74 = arith.constant 0.000000e+00 : f32
    %378 = vector.shape_cast %371 : vector<8x1xi1> to vector<8x1xi1>
    %379 = vector.broadcast %378 : vector<8x1xi1> to vector<8x32xi1>
    %380 = vector.broadcast %cst_74 : f32 to vector<8x32xf32>
    %381 = arith.select %379, %369, %380 : vector<8x32xi1>, vector<8x32xf32>
    %c8_i32_75 = arith.constant 8 : i32
    %382 = arith.cmpi slt, %339, %c8_i32_75 : i32
    %383 = arith.maximumf %337, %381 : vector<8x32xf32>
    %384 = arith.select %382, %383, %337 : vector<8x32xf32>
    %385 = arith.addf %338, %381 : vector<8x32xf32>
    %c8_i32_76 = arith.constant 8 : i32
    %c0_77 = arith.constant 0 : index
    %c0_78 = arith.constant 0 : index
    %386 = vector.load %arg10[%c0_77, %c0_78] : memref<8x32xf32, #tpu.memory_space<vmem>>, vector<8x32xf32>
    tpu.vector_store %arg10[%c0_77, %c0_78], %374 {strides = array<i32>} : memref<8x32xf32, #tpu.memory_space<vmem>>, vector<8x32xf32>,
    %c0_79 = arith.constant 0 : index
    %c0_80 = arith.constant 0 : index
    %387 = vector.load %arg11[%c0_79, %c0_80] : memref<8x32xf32, #tpu.memory_space<vmem>>, vector<8x32xf32>
    tpu.vector_store %arg11[%c0_79, %c0_80], %377 {strides = array<i32>} : memref<8x32xf32, #tpu.memory_space<vmem>>, vector<8x32xf32>,
    %c0_81 = arith.constant 0 : index
    %c0_82 = arith.constant 0 : index
    %388 = vector.load %arg12[%c0_81, %c0_82] : memref<8x32xf32, #tpu.memory_space<vmem>>, vector<8x32xf32>
    tpu.vector_store %arg12[%c0_81, %c0_82], %384 {strides = array<i32>} : memref<8x32xf32, #tpu.memory_space<vmem>>, vector<8x32xf32>,
    %c0_83 = arith.constant 0 : index
    %c0_84 = arith.constant 0 : index
    %389 = vector.load %arg13[%c0_83, %c0_84] : memref<8x32xf32, #tpu.memory_space<vmem>>, vector<8x32xf32>
    tpu.vector_store %arg13[%c0_83, %c0_84], %385 {strides = array<i32>} : memref<8x32xf32, #tpu.memory_space<vmem>>, vector<8x32xf32>,
    %c0_i32_85 = arith.constant 0 : i32
    %390 = arith.cmpi eq, %arg0, %c0_i32_85 : i32
    %391 = arith.extui %390 : i1 to i32
    %c0_i32_86 = arith.constant 0 : i32
    %392 = arith.cmpi ne, %391, %c0_i32_86 : i32
    scf.if %392 {
      %cst_87 = arith.constant 1.250000e-01 : f32
      %393 = vector.broadcast %cst_87 : f32 to vector<8x32xf32>
      %394 = arith.mulf %385, %393 : vector<8x32xf32>
      %c0_88 = arith.constant 0 : index
      %c0_89 = arith.constant 0 : index
      %395 = vector.load %arg4[%c0_88, %c0_89] : memref<32x32xf32, #tpu.memory_space<vmem>>, vector<32x32xf32>
      %cst_90 = arith.constant dense<0.000000e+00> : vector<8x32xf32>
      %396 = tpu.matmul %384, %395, %cst_90 {dimension_numbers = #tpu.dot_dimension_numbers<[1], [0], [0], [1], [0, 0, 1, 1], [], []>} : vector<8x32xf32>, vector<32x32xf32>, vector<8x32xf32> -> vector<8x32xf32>
      %c0_91 = arith.constant 0 : index
      %c0_92 = arith.constant 0 : index
      %397 = vector.load %arg5[%c0_91, %c0_92] : memref<32x32xf32, #tpu.memory_space<vmem>>, vector<32x32xf32>
      %cst_93 = arith.constant dense<0.000000e+00> : vector<8x32xf32>
      %398 = tpu.matmul %394, %397, %cst_93 {dimension_numbers = #tpu.dot_dimension_numbers<[1], [0], [0], [1], [0, 0, 1, 1], [], []>} : vector<8x32xf32>, vector<32x32xf32>, vector<8x32xf32> -> vector<8x32xf32>
      %399 = arith.addf %396, %398 : vector<8x32xf32>
      %c0_94 = arith.constant 0 : index
      %c0_95 = arith.constant 0 : index
      %400 = vector.load %arg6[%c0_94, %c0_95] : memref<1x32xf32, #tpu.memory_space<vmem>>, vector<1x32xf32>
      %401 = vector.broadcast %400 : vector<1x32xf32> to vector<8x32xf32>
      %402 = arith.addf %399, %401 : vector<8x32xf32>
      %cst_96 = arith.constant 0.000000e+00 : f32
      %403 = vector.broadcast %cst_96 : f32 to vector<8x32xf32>
      %404 = arith.maximumf %402, %403 : vector<8x32xf32>
      %c0_97 = arith.constant 0 : index
      %c0_98 = arith.constant 0 : index
      %405 = vector.load %arg7[%c0_97, %c0_98] : memref<32x8xf32, #tpu.memory_space<vmem>>, vector<32x8xf32>
      %cst_99 = arith.constant dense<0.000000e+00> : vector<8x8xf32>
      %406 = tpu.matmul %404, %405, %cst_99 {dimension_numbers = #tpu.dot_dimension_numbers<[1], [0], [0], [1], [0, 0, 1, 1], [], []>} : vector<8x32xf32>, vector<32x8xf32>, vector<8x8xf32> -> vector<8x8xf32>
      %c0_100 = arith.constant 0 : index
      %c0_101 = arith.constant 0 : index
      %407 = vector.load %arg8[%c0_100, %c0_101] : memref<1x8xf32, #tpu.memory_space<vmem>>, vector<1x8xf32>
      %408 = vector.broadcast %407 : vector<1x8xf32> to vector<8x8xf32>
      %409 = arith.addf %406, %408 : vector<8x8xf32>
      %c0_102 = arith.constant 0 : index
      %c0_103 = arith.constant 0 : index
      %410 = vector.load %arg9[%c0_102, %c0_103] : memref<8x8xf32, #tpu.memory_space<vmem>>, vector<8x8xf32>
      tpu.vector_store %arg9[%c0_102, %c0_103], %409 {strides = array<i32>} : memref<8x8xf32, #tpu.memory_space<vmem>>, vector<8x8xf32>,
    } else {
    }
    return
  }
  func.func @transform_0(%arg0: i32) -> (i32, i32, i32) {
    %c0_i32 = arith.constant 0 : i32
    %c0_i32_0 = arith.constant 0 : i32
    %c0_i32_1 = arith.constant 0 : i32
    return %arg0, %c0_i32, %c0_i32_0 : i32, i32, i32
  }
  func.func @transform_1(%arg0: i32) -> (i32, i32) {
    %c0_i32 = arith.constant 0 : i32
    %c0_i32_0 = arith.constant 0 : i32
    %c0_i32_1 = arith.constant 0 : i32
    return %c0_i32, %c0_i32_0 : i32, i32
  }
  func.func @transform_2(%arg0: i32) -> (i32, i32) {
    %c0_i32 = arith.constant 0 : i32
    %c0_i32_0 = arith.constant 0 : i32
    %c0_i32_1 = arith.constant 0 : i32
    return %c0_i32, %c0_i32_0 : i32, i32
  }
  func.func @transform_3(%arg0: i32) -> (i32, i32) {
    %c0_i32 = arith.constant 0 : i32
    %c0_i32_0 = arith.constant 0 : i32
    %c0_i32_1 = arith.constant 0 : i32
    return %c0_i32, %c0_i32_0 : i32, i32
  }
  func.func @transform_4(%arg0: i32) -> (i32, i32) {
    %c0_i32 = arith.constant 0 : i32
    %c0_i32_0 = arith.constant 0 : i32
    %c0_i32_1 = arith.constant 0 : i32
    return %c0_i32, %c0_i32_0 : i32, i32
  }
  func.func @transform_5(%arg0: i32) -> (i32, i32) {
    %c0_i32 = arith.constant 0 : i32
    %c0_i32_0 = arith.constant 0 : i32
    %c0_i32_1 = arith.constant 0 : i32
    return %c0_i32, %c0_i32_0 : i32, i32
  }
  func.func @transform_6(%arg0: i32) -> (i32, i32) {
    %c0_i32 = arith.constant 0 : i32
    %c0_i32_0 = arith.constant 0 : i32
    %c0_i32_1 = arith.constant 0 : i32
    return %c0_i32, %c0_i32_0 : i32, i32
  }
  func.func @transform_7(%arg0: i32) -> (i32, i32) {
    %c0_i32 = arith.constant 0 : i32
    %c0_i32_0 = arith.constant 0 : i32
    %c0_i32_1 = arith.constant 0 : i32
    return %c0_i32, %c0_i32_0 : i32, i32
  }
  func.func @transform_8(%arg0: i32) -> (i32, i32) {
    %c0_i32 = arith.constant 0 : i32
    %c0_i32_0 = arith.constant 0 : i32
    %c0_i32_1 = arith.constant 0 : i32
    return %c0_i32, %c0_i32_0 : i32, i32
  }
}

</mosaic_0001>

<llo_original>
// kernel: tpu_custom_call.1
$region0: #{tpu_custom_call.1}
  #allocation0 [shape = 'u32[]', space=smem, size = 0x4, offset = 0x4, fixed_abs, tag = 'smem constant byte address 0x4 - core index']
  #allocation1 [shape = 'u32[144,128]{1,0:T(1,128)}', space=vmem, size = 0x12000, scoped, tag = 'internal scratch']
  #allocation2 [shape = 'f32[8,32]{1,0:T(8,128)}', space=vmem, size = 0x1000, scoped, tag = 'scratch operand']
  #allocation3 [shape = 'f32[8,32]{1,0:T(8,128)}', space=vmem, size = 0x1000, scoped, tag = 'scratch operand']
  #allocation4 [shape = 'f32[8,32]{1,0:T(8,128)}', space=vmem, size = 0x1000, scoped, tag = 'scratch operand']
  #allocation5 [shape = 'f32[8,32]{1,0:T(8,128)}', space=vmem, size = 0x1000, scoped, tag = 'scratch operand']
  %s0 = inlined_call_operand.hbm [shape: f32[8,8,128], index: 0, kind: input, shape index: {}]
  %s1 = inlined_call_operand.vmem [shape: s32[8,1], index: 1, kind: input, shape index: {}]
  %s2 = inlined_call_operand.vmem [shape: f32[32,128], index: 2, kind: input, shape index: {}]
  %s3 = inlined_call_operand.hbm [shape: f32[32,32], index: 3, kind: input, shape index: {}]
  %s4 = inlined_call_operand.hbm [shape: f32[32,32], index: 4, kind: input, shape index: {}]
  %s5 = inlined_call_operand.vmem [shape: f32[1,32], index: 5, kind: input, shape index: {}]
  %s6 = inlined_call_operand.vmem [shape: f32[32,8], index: 6, kind: input, shape index: {}]
  %s7 = inlined_call_operand.vmem [shape: f32[1,8], index: 7, kind: input, shape index: {}]
  %s8 = inlined_call_operand.hbm [shape: f32[8,8], index: 8, kind: output, shape index: {}]
  %s9 = sld [smem:[#allocation0]]
  $region62: #{tpu_custom_call.1} parent=0
    _
  %s11 = ssub.s32 1, %s9
  %s12 = scalar_select 0, %s11, %s9
  $region1: #{tpu_custom_call.1} parent=0
    #allocation6 [shape = 'u8[32768]{0}', space=vmem, size = 0x8000, scoped, tag = 'input window, operand 0, single buffered']
    #allocation7 [shape = 's32[1]{0}', space=sflag, size = 0x4, scoped, tag = 'scoped memory for tpu_custom_call.1']
    #allocation8 [shape = 's32[1]{0}', space=sflag, size = 0x4, scoped, tag = 'scoped memory for tpu_custom_call.1']
    #allocation9 [shape = 'u8[16384]{0}', space=vmem, size = 0x4000, scoped, tag = 'input window, operand 3, single buffered']
    #allocation10 [shape = 's32[1]{0}', space=sflag, size = 0x4, scoped, tag = 'scoped memory for tpu_custom_call.1']
    #allocation11 [shape = 'u8[16384]{0}', space=vmem, size = 0x4000, scoped, tag = 'input window, operand 4, single buffered']
    #allocation12 [shape = 'u8[4096]{0}', space=vmem, size = 0x1000, scoped, tag = 'output window, operand 0, single buffered']
    %13 = vsyncpa [#allocation7], 0
    %14 = vsyncpa [#allocation10], 0
    %15 = vsyncpa [#allocation8], 0
    // Predicated region
    $region2: #{tpu_custom_call.1} parent=1 // pred_check
      _
    $region3: #{tpu_custom_call.1} parent=1 // pred_check_branch
      %17 = sbr.rel (0) target = $region5
    $region4: #{tpu_custom_call.1} parent=1 // pred_region
      %s19 = ssub.s32 1024, 1024
      %20 = vsyncadd [#allocation7], %s19
      %s21 = sshll.u32 [#allocation6], 4
      %s22 = int_to_ptr.vmem [resolvable:$true] %s21
      %27 = dma.hbm_to_vmem [thread:$0]  %s0, 1024, %s22, [#allocation7], 128, 128, 8
    $region5: #{tpu_custom_call.1} parent=1 // pred_fallthru
      _
    // Predicated region
    $region6: #{tpu_custom_call.1} parent=1 // pred_check
      _
    $region7: #{tpu_custom_call.1} parent=1 // pred_check_branch
      %29 = sbr.rel (0) target = $region9
    $region8: #{tpu_custom_call.1} parent=1 // pred_region
      _
    $region9: #{tpu_custom_call.1} parent=1 // pred_fallthru
      _
    // Predicated region
    $region10: #{tpu_custom_call.1} parent=1 // pred_check
      _
    $region11: #{tpu_custom_call.1} parent=1 // pred_check_branch
      %31 = sbr.rel (0) target = $region13
    $region12: #{tpu_custom_call.1} parent=1 // pred_region
      _
    $region13: #{tpu_custom_call.1} parent=1 // pred_fallthru
      _
    // Predicated region
    $region14: #{tpu_custom_call.1} parent=1 // pred_check
      _
    $region15: #{tpu_custom_call.1} parent=1 // pred_check_branch
      %33 = sbr.rel (0) target = $region17
    $region16: #{tpu_custom_call.1} parent=1 // pred_region
      %s35 = ssub.s32 512, 512
      %36 = vsyncadd [#allocation10], %s35
      %s37 = sshll.u32 [#allocation9], 4
      %s38 = int_to_ptr.vmem [resolvable:$true] %s37
      %43 = dma.hbm_to_vmem [thread:$0]  %s3, 512, %s38, [#allocation10], 128, 128, 8
    $region17: #{tpu_custom_call.1} parent=1 // pred_fallthru
      _
    // Predicated region
    $region18: #{tpu_custom_call.1} parent=1 // pred_check
      _
    $region19: #{tpu_custom_call.1} parent=1 // pred_check_branch
      %45 = sbr.rel (0) target = $region21
    $region20: #{tpu_custom_call.1} parent=1 // pred_region
      %s47 = ssub.s32 512, 512
      %48 = vsyncadd [#allocation10], %s47
      %s49 = sshll.u32 [#allocation11], 4
      %s50 = int_to_ptr.vmem [resolvable:$true] %s49
      %55 = dma.hbm_to_vmem [thread:$0]  %s4, 512, %s50, [#allocation10], 128, 128, 8
    $region21: #{tpu_custom_call.1} parent=1 // pred_fallthru
      _
    // Predicated region
    $region22: #{tpu_custom_call.1} parent=1 // pred_check
      _
    $region23: #{tpu_custom_call.1} parent=1 // pred_check_branch
      %57 = sbr.rel (0) target = $region25
    $region24: #{tpu_custom_call.1} parent=1 // pred_region
      _
    $region25: #{tpu_custom_call.1} parent=1 // pred_fallthru
      _
    // Predicated region
    $region26: #{tpu_custom_call.1} parent=1 // pred_check
      _
    $region27: #{tpu_custom_call.1} parent=1 // pred_check_branch
      %59 = sbr.rel (0) target = $region29
    $region28: #{tpu_custom_call.1} parent=1 // pred_region
      _
    $region29: #{tpu_custom_call.1} parent=1 // pred_fallthru
      _
    // Predicated region
    $region30: #{tpu_custom_call.1} parent=1 // pred_check
      _
    $region31: #{tpu_custom_call.1} parent=1 // pred_check_branch
      %61 = sbr.rel (0) target = $region33
    $region32: #{tpu_custom_call.1} parent=1 // pred_region
      _
    $region33: #{tpu_custom_call.1} parent=1 // pred_fallthru
      _
    // Predicated region
    $region34: #{tpu_custom_call.1} parent=1 // pred_check
      _
    $region35: #{tpu_custom_call.1} parent=1 // pred_check_branch
      %63 = sbr.rel (0) target = $region37
    $region36: #{tpu_custom_call.1} parent=1 // pred_region
      %64 = dma.done [#allocation7], 1024
    $region37: #{tpu_custom_call.1} parent=1 // pred_fallthru
      _
    // Predicated region
    $region38: #{tpu_custom_call.1} parent=1 // pred_check
      _
    $region39: #{tpu_custom_call.1} parent=1 // pred_check_branch
      %66 = sbr.rel (0) target = $region41
    $region40: #{tpu_custom_call.1} parent=1 // pred_region
      %67 = dma.done [#allocation10], 512
    $region41: #{tpu_custom_call.1} parent=1 // pred_fallthru
      _
    // Predicated region
    $region42: #{tpu_custom_call.1} parent=1 // pred_check
      _
    $region43: #{tpu_custom_call.1} parent=1 // pred_check_branch
      %69 = sbr.rel (0) target = $region45
    $region44: #{tpu_custom_call.1} parent=1 // pred_region
      %70 = dma.done [#allocation10], 512
    $region45: #{tpu_custom_call.1} parent=1 // pred_fallthru
      _
    %p71 = scmp.eq.s32.totalorder 0, 0
    // Predicated region
    $region46: #{tpu_custom_call.1} parent=1 // pred_check
      %p72 = pneg %p71
    $region47: #{tpu_custom_call.1} parent=1 // pred_check_branch
      %74 = sbr.rel (%p72) target = $region49
    $region48: #{tpu_custom_call.1} parent=1 // pred_region
      %vm75 = vcmask 261120
      %76 = vst.msk [vmem:[#allocation2] sm:$0xff] %vm75, 0.0
      %77 = vst.msk [vmem:[#allocation3] sm:$0xff] %vm75, 0.0
      %78 = vst.msk [vmem:[#allocation4] sm:$0xff] %vm75, -inf
      %79 = vst.msk [vmem:[#allocation5] sm:$0xff] %vm75, 0.0
    $region49: #{tpu_custom_call.1} parent=1 // pred_fallthru
      _
    %v80 = vld [vmem:[%s1] sm:$0xff]
    %v81 = vld [vmem:[%s2] sm:$0xff]
    %v82 = vld [vmem:[%s2 + $0x8] sm:$0xff]
    %v83 = vld [vmem:[%s2 + $0x10] sm:$0xff]
    %v84 = vld [vmem:[%s2 + $0x18] sm:$0xff]
    %s85 = smul.u32 0, 8
    %v86 = vld [vmem:[#allocation2] sm:$0xff]
    %v87 = vld [vmem:[#allocation3] sm:$0xff]
    %v88 = vld [vmem:[#allocation4] sm:$0xff]
    %v89 = vld [vmem:[#allocation5] sm:$0xff]
    %v90 = vld [vmem:[#allocation6] sm:$0xff]
    %vm91 = vcmask 261120
    %v93 = vsel %vm91, %v86, 0
    %95 = vmatprep.subr.mxu0 0.0
    %96 = vmatpush1.msra.mxu0 0.0
    %97 = vmatprep.subr.mxu0 0.0
    %98 = vmatpush1.msra.mxu0 0.0
    %99 = vmatprep.subr.mxu0 0.0
    %100 = vmatpush1.msra.mxu0 0.0
    %101 = vmatprep.subr.mxu0 0.0
    %102 = vmatpush1.msra.mxu0 0.0
    %103 = vmatprep.subr.mxu0 0.0
    %104 = vmatpush1.msra.mxu0 0.0
    %105 = vmatprep.subr.mxu0 0.0
    %106 = vmatpush1.msra.mxu0 0.0
    %107 = vmatprep.subr.mxu0 0.0
    %108 = vmatpush1.msra.mxu0 0.0
    %109 = vmatprep.subr.mxu0 0.0
    %110 = vmatpush1.msra.mxu0 0.0
    %111 = vmatprep.subr.mxu0 0.0
    %112 = vmatpush1.msra.mxu0 0.0
    %113 = vmatprep.subr.mxu0 0.0
    %114 = vmatpush1.msra.mxu0 0.0
    %115 = vmatprep.subr.mxu0 0.0
    %116 = vmatpush1.msra.mxu0 0.0
    %117 = vmatprep.subr.mxu0 0.0
    %118 = vmatpush1.msra.mxu0 0.0
    %119 = vmatprep.subr.mxu0 0.0
    %120 = vmatpush1.msra.mxu0 %v84
    %121 = vmatprep.subr.mxu0 0.0
    %122 = vmatpush1.msra.mxu0 %v83
    %123 = vmatprep.subr.mxu0 0.0
    %124 = vmatpush1.msra.mxu0 %v82
    %125 = vmatprep.subr.mxu0 0.0
    %126 = vmatpush1.msra.mxu0 %v81
    %127 = vmatprep.subr.mxu0 0.0
    %128 = vmatpush2.msra.mxu0 0.0
    %129 = vmatprep.subr.mxu0 0.0
    %130 = vmatpush2.msra.mxu0 0.0
    %131 = vmatprep.subr.mxu0 0.0
    %132 = vmatpush2.msra.mxu0 0.0
    %133 = vmatprep.subr.mxu0 0.0
    %134 = vmatpush2.msra.mxu0 0.0
    %135 = vmatprep.subr.mxu0 0.0
    %136 = vmatpush2.msra.mxu0 0.0
    %137 = vmatprep.subr.mxu0 0.0
    %138 = vmatpush2.msra.mxu0 0.0
    %139 = vmatprep.subr.mxu0 0.0
    %140 = vmatpush2.msra.mxu0 0.0
    %141 = vmatprep.subr.mxu0 0.0
    %142 = vmatpush2.msra.mxu0 0.0
    %143 = vmatprep.subr.mxu0 0.0
    %144 = vmatpush2.msra.mxu0 0.0
    %145 = vmatprep.subr.mxu0 0.0
    %146 = vmatpush2.msra.mxu0 0.0
    %147 = vmatprep.subr.mxu0 0.0
    %148 = vmatpush2.msra.mxu0 0.0
    %149 = vmatprep.subr.mxu0 0.0
    %150 = vmatpush2.msra.mxu0 0.0
    %151 = vmatprep.subr.mxu0 0.0
    %152 = vmatpush2.msra.mxu0 0.0
    %153 = vmatprep.subr.mxu0 0.0
    %154 = vmatpush2.msra.mxu0 0.0
    %155 = vmatprep.subr.mxu0 0.0
    %156 = vmatpush2.msra.mxu0 0.0
    %157 = vmatprep.subr.mxu0 0.0
    %158 = vmatpush2.msra.mxu0 0.0
    %159 = vmatprep.mubr.f32.mxu0 0.0
    %160 = vmatmul.mubr.f32.gmra.mxu0 %v93
    %v161 = vpop.f32.mrf.mxu0
    %v162 = vadd.f32 0.0, %v161
    %v163 = vpop.f32.mrf.mxu0
    %164 = vdwg.mxu0
    %v165 = vadd.f32 %v90, %v162
    %v166 = vxor.u32 %v165, 2147483648
    %v167 = vmul.f32 %v166, 1.442695
    %v168 = vpow.pop %v167
    %v169 = vadd.f32 %v168, 1.0
    %v170 = vrcp.pop %v169
    %v171 = vmul.f32 1.0, %v170
    %v172 = vtanh.pop %v165
    %174 = vrot.lane.b32.xlu0 %v87, 32
    %v175 = vpop.permute.xlu0 %174
    %v177 = vmul.f32 %v171, %v175
    %179 = vrot.lane.b32.xlu0 %v172, 64
    %v180 = vpop.permute.xlu0 %179
    %v182 = vmul.f32 %v171, %v180
    %184 = vrot.lane.b32.xlu0 %v182, 32
    %v185 = vpop.permute.xlu0 %184
    %v187 = vadd.f32 %v177, %v185
    %v188 = vtanh.pop %v187
    %190 = vrot.lane.b32.xlu0 %v188, 64
    %v191 = vpop.permute.xlu0 %190
    %v193 = vmul.f32 %v171, %v191
    %v194 = vstv %s85
    %vm195 = vcmp.lt.s32.totalorder %v194, %v80
    %v196 = vsel %vm195, 1, 0
    %197 = vset.pattern.permute.xlu0 0
    %198 = vperm.xlu0 %197, %v196
    %v199 = vpop.permute.xlu0 %198
    %vm200 = vcmp.eq.s32.totalorder %v199, 1
    %201 = vrot.lane.b32.xlu0 %v86, 96
    %v202 = vpop.permute.xlu0 %201
    %v204 = vsel %vm200, %v193, %v202
    %v205 = vsel %vm200, %v187, %v175
    %v206 = vsel %vm200, %v193, 0.0
    %p207 = scmp.lt.s32.totalorder %s85, 8
    %209 = vrot.lane.b32.xlu0 %v206, 32
    %v210 = vpop.permute.xlu0 %209
    %v212 = vmax.f32 %v88, %v210
    %s213 = scalar_select %p207, 1, 0
    %v214 = vstv %s213
    %vm215 = vcmp.eq.s32.totalorder %v214, 1
    %v216 = vsel %vm215, %v212, %v88
    %v217 = vadd.f32 %v89, %v210
    %s218 = sadd.s32 %s85, 1
    %s219 = scalar_lea.vmem [#allocation6], 8
    %v220 = vld [vmem:[%s219] sm:$0xff]
    %222 = vrot.lane.b32.xlu0 %v204, 32
    %v223 = vpop.permute.xlu0 %222
    %v224 = vsel %vm91, %v223, 0
    %226 = vmatprep.subr.mxu0 0.0
    %227 = vmatpush1.msra.mxu0 0.0
    %228 = vmatprep.subr.mxu0 0.0
    %229 = vmatpush1.msra.mxu0 0.0
    %230 = vmatprep.subr.mxu0 0.0
    %231 = vmatpush1.msra.mxu0 0.0
    %232 = vmatprep.subr.mxu0 0.0
    %233 = vmatpush1.msra.mxu0 0.0
    %234 = vmatprep.subr.mxu0 0.0
    %235 = vmatpush1.msra.mxu0 0.0
    %236 = vmatprep.subr.mxu0 0.0
    %237 = vmatpush1.msra.mxu0 0.0
    %238 = vmatprep.subr.mxu0 0.0
    %239 = vmatpush1.msra.mxu0 0.0
    %240 = vmatprep.subr.mxu0 0.0
    %241 = vmatpush1.msra.mxu0 0.0
    %242 = vmatprep.subr.mxu0 0.0
    %243 = vmatpush1.msra.mxu0 0.0
    %244 = vmatprep.subr.mxu0 0.0
    %245 = vmatpush1.msra.mxu0 0.0
    %246 = vmatprep.subr.mxu0 0.0
    %247 = vmatpush1.msra.mxu0 0.0
    %248 = vmatprep.subr.mxu0 0.0
    %249 = vmatpush1.msra.mxu0 0.0
    %250 = vmatprep.subr.mxu0 0.0
    %251 = vmatpush1.msra.mxu0 %v84
    %252 = vmatprep.subr.mxu0 0.0
    %253 = vmatpush1.msra.mxu0 %v83
    %254 = vmatprep.subr.mxu0 0.0
    %255 = vmatpush1.msra.mxu0 %v82
    %256 = vmatprep.subr.mxu0 0.0
    %257 = vmatpush1.msra.mxu0 %v81
    %258 = vmatprep.subr.mxu0 0.0
    %259 = vmatpush2.msra.mxu0 0.0
    %260 = vmatprep.subr.mxu0 0.0
    %261 = vmatpush2.msra.mxu0 0.0
    %262 = vmatprep.subr.mxu0 0.0
    %263 = vmatpush2.msra.mxu0 0.0
    %264 = vmatprep.subr.mxu0 0.0
    %265 = vmatpush2.msra.mxu0 0.0
    %266 = vmatprep.subr.mxu0 0.0
    %267 = vmatpush2.msra.mxu0 0.0
    %268 = vmatprep.subr.mxu0 0.0
    %269 = vmatpush2.msra.mxu0 0.0
    %270 = vmatprep.subr.mxu0 0.0
    %271 = vmatpush2.msra.mxu0 0.0
    %272 = vmatprep.subr.mxu0 0.0
    %273 = vmatpush2.msra.mxu0 0.0
    %274 = vmatprep.subr.mxu0 0.0
    %275 = vmatpush2.msra.mxu0 0.0
    %276 = vmatprep.subr.mxu0 0.0
    %277 = vmatpush2.msra.mxu0 0.0
    %278 = vmatprep.subr.mxu0 0.0
    %279 = vmatpush2.msra.mxu0 0.0
    %280 = vmatprep.subr.mxu0 0.0
    %281 = vmatpush2.msra.mxu0 0.0
    %282 = vmatprep.subr.mxu0 0.0
    %283 = vmatpush2.msra.mxu0 0.0
    %284 = vmatprep.subr.mxu0 0.0
    %285 = vmatpush2.msra.mxu0 0.0
    %286 = vmatprep.subr.mxu0 0.0
    %287 = vmatpush2.msra.mxu0 0.0
    %288 = vmatprep.subr.mxu0 0.0
    %289 = vmatpush2.msra.mxu0 0.0
    %290 = vmatprep.mubr.f32.mxu0 0.0
    %291 = vmatmul.mubr.f32.gmra.mxu0 %v224
    %v292 = vpop.f32.mrf.mxu0
    %v293 = vadd.f32 0.0, %v292
    %v294 = vpop.f32.mrf.mxu0
    %295 = vdwg.mxu0
    %v296 = vadd.f32 %v220, %v293
    %v297 = vxor.u32 %v296, 2147483648
    %v298 = vmul.f32 %v297, 1.442695
    %v299 = vpow.pop %v298
    %v300 = vadd.f32 %v299, 1.0
    %v301 = vrcp.pop %v300
    %v302 = vmul.f32 1.0, %v301
    %v303 = vtanh.pop %v296
    %v304 = vmul.f32 %v302, %v205
    %306 = vrot.lane.b32.xlu0 %v303, 64
    %v307 = vpop.permute.xlu0 %306
    %v309 = vmul.f32 %v302, %v307
    %311 = vrot.lane.b32.xlu0 %v309, 32
    %v312 = vpop.permute.xlu0 %311
    %v314 = vadd.f32 %v304, %v312
    %v315 = vtanh.pop %v314
    %317 = vrot.lane.b32.xlu0 %v315, 64
    %v318 = vpop.permute.xlu0 %317
    %v320 = vmul.f32 %v302, %v318
    %v321 = vstv %s218
    %vm322 = vcmp.lt.s32.totalorder %v321, %v80
    %v323 = vsel %vm322, 1, 0
    %324 = vset.pattern.permute.xlu0 0
    %325 = vperm.xlu0 %324, %v323
    %v326 = vpop.permute.xlu0 %325
    %vm327 = vcmp.eq.s32.totalorder %v326, 1
    %v328 = vsel %vm327, %v320, %v204
    %v329 = vsel %vm327, %v314, %v205
    %v330 = vsel %vm327, %v320, 0.0
    %p331 = scmp.lt.s32.totalorder %s218, 8
    %333 = vrot.lane.b32.xlu0 %v330, 32
    %v334 = vpop.permute.xlu0 %333
    %v336 = vmax.f32 %v216, %v334
    %s337 = scalar_select %p331, 1, 0
    %v338 = vstv %s337
    %vm339 = vcmp.eq.s32.totalorder %v338, 1
    %v340 = vsel %vm339, %v336, %v216
    %v341 = vadd.f32 %v217, %v334
    %s342 = sadd.s32 %s85, 2
    %s343 = scalar_lea.vmem [#allocation6], 16
    %v344 = vld [vmem:[%s343] sm:$0xff]
    %346 = vrot.lane.b32.xlu0 %v328, 32
    %v347 = vpop.permute.xlu0 %346
    %v348 = vsel %vm91, %v347, 0
    %350 = vmatprep.subr.mxu0 0.0
    %351 = vmatpush1.msra.mxu0 0.0
    %352 = vmatprep.subr.mxu0 0.0
    %353 = vmatpush1.msra.mxu0 0.0
    %354 = vmatprep.subr.mxu0 0.0
    %355 = vmatpush1.msra.mxu0 0.0
    %356 = vmatprep.subr.mxu0 0.0
    %357 = vmatpush1.msra.mxu0 0.0
    %358 = vmatprep.subr.mxu0 0.0
    %359 = vmatpush1.msra.mxu0 0.0
    %360 = vmatprep.subr.mxu0 0.0
    %361 = vmatpush1.msra.mxu0 0.0
    %362 = vmatprep.subr.mxu0 0.0
    %363 = vmatpush1.msra.mxu0 0.0
    %364 = vmatprep.subr.mxu0 0.0
    %365 = vmatpush1.msra.mxu0 0.0
    %366 = vmatprep.subr.mxu0 0.0
    %367 = vmatpush1.msra.mxu0 0.0
    %368 = vmatprep.subr.mxu0 0.0
    %369 = vmatpush1.msra.mxu0 0.0
    %370 = vmatprep.subr.mxu0 0.0
    %371 = vmatpush1.msra.mxu0 0.0
    %372 = vmatprep.subr.mxu0 0.0
    %373 = vmatpush1.msra.mxu0 0.0
    %374 = vmatprep.subr.mxu0 0.0
    %375 = vmatpush1.msra.mxu0 %v84
    %376 = vmatprep.subr.mxu0 0.0
    %377 = vmatpush1.msra.mxu0 %v83
    %378 = vmatprep.subr.mxu0 0.0
    %379 = vmatpush1.msra.mxu0 %v82
    %380 = vmatprep.subr.mxu0 0.0
    %381 = vmatpush1.msra.mxu0 %v81
    %382 = vmatprep.subr.mxu0 0.0
    %383 = vmatpush2.msra.mxu0 0.0
    %384 = vmatprep.subr.mxu0 0.0
    %385 = vmatpush2.msra.mxu0 0.0
    %386 = vmatprep.subr.mxu0 0.0
    %387 = vmatpush2.msra.mxu0 0.0
    %388 = vmatprep.subr.mxu0 0.0
    %389 = vmatpush2.msra.mxu0 0.0
    %390 = vmatprep.subr.mxu0 0.0
    %391 = vmatpush2.msra.mxu0 0.0
    %392 = vmatprep.subr.mxu0 0.0
    %393 = vmatpush2.msra.mxu0 0.0
    %394 = vmatprep.subr.mxu0 0.0
    %395 = vmatpush2.msra.mxu0 0.0
    %396 = vmatprep.subr.mxu0 0.0
    %397 = vmatpush2.msra.mxu0 0.0
    %398 = vmatprep.subr.mxu0 0.0
    %399 = vmatpush2.msra.mxu0 0.0
    %400 = vmatprep.subr.mxu0 0.0
    %401 = vmatpush2.msra.mxu0 0.0
    %402 = vmatprep.subr.mxu0 0.0
    %403 = vmatpush2.msra.mxu0 0.0
    %404 = vmatprep.subr.mxu0 0.0
    %405 = vmatpush2.msra.mxu0 0.0
    %406 = vmatprep.subr.mxu0 0.0
    %407 = vmatpush2.msra.mxu0 0.0
    %408 = vmatprep.subr.mxu0 0.0
    %409 = vmatpush2.msra.mxu0 0.0
    %410 = vmatprep.subr.mxu0 0.0
    %411 = vmatpush2.msra.mxu0 0.0
    %412 = vmatprep.subr.mxu0 0.0
    %413 = vmatpush2.msra.mxu0 0.0
    %414 = vmatprep.mubr.f32.mxu0 0.0
    %415 = vmatmul.mubr.f32.gmra.mxu0 %v348
    %v416 = vpop.f32.mrf.mxu0
    %v417 = vadd.f32 0.0, %v416
    %v418 = vpop.f32.mrf.mxu0
    %419 = vdwg.mxu0
    %v420 = vadd.f32 %v344, %v417
    %v421 = vxor.u32 %v420, 2147483648
    %v422 = vmul.f32 %v421, 1.442695
    %v423 = vpow.pop %v422
    %v424 = vadd.f32 %v423, 1.0
    %v425 = vrcp.pop %v424
    %v426 = vmul.f32 1.0, %v425
    %v427 = vtanh.pop %v420
    %v428 = vmul.f32 %v426, %v329
    %430 = vrot.lane.b32.xlu0 %v427, 64
    %v431 = vpop.permute.xlu0 %430
    %v433 = vmul.f32 %v426, %v431
    %435 = vrot.lane.b32.xlu0 %v433, 32
    %v436 = vpop.permute.xlu0 %435
    %v438 = vadd.f32 %v428, %v436
    %v439 = vtanh.pop %v438
    %441 = vrot.lane.b32.xlu0 %v439, 64
    %v442 = vpop.permute.xlu0 %441
    %v444 = vmul.f32 %v426, %v442
    %v445 = vstv %s342
    %vm446 = vcmp.lt.s32.totalorder %v445, %v80
    %v447 = vsel %vm446, 1, 0
    %448 = vset.pattern.permute.xlu0 0
    %449 = vperm.xlu0 %448, %v447
    %v450 = vpop.permute.xlu0 %449
    %vm451 = vcmp.eq.s32.totalorder %v450, 1
    %v452 = vsel %vm451, %v444, %v328
    %v453 = vsel %vm451, %v438, %v329
    %v454 = vsel %vm451, %v444, 0.0
    %p455 = scmp.lt.s32.totalorder %s342, 8
    %457 = vrot.lane.b32.xlu0 %v454, 32
    %v458 = vpop.permute.xlu0 %457
    %v460 = vmax.f32 %v340, %v458
    %s461 = scalar_select %p455, 1, 0
    %v462 = vstv %s461
    %vm463 = vcmp.eq.s32.totalorder %v462, 1
    %v464 = vsel %vm463, %v460, %v340
    %v465 = vadd.f32 %v341, %v458
    %s466 = sadd.s32 %s85, 3
    %s467 = scalar_lea.vmem [#allocation6], 24
    %v468 = vld [vmem:[%s467] sm:$0xff]
    %470 = vrot.lane.b32.xlu0 %v452, 32
    %v471 = vpop.permute.xlu0 %470
    %v472 = vsel %vm91, %v471, 0
    %474 = vmatprep.subr.mxu0 0.0
    %475 = vmatpush1.msra.mxu0 0.0
    %476 = vmatprep.subr.mxu0 0.0
    %477 = vmatpush1.msra.mxu0 0.0
    %478 = vmatprep.subr.mxu0 0.0
    %479 = vmatpush1.msra.mxu0 0.0
    %480 = vmatprep.subr.mxu0 0.0
    %481 = vmatpush1.msra.mxu0 0.0
    %482 = vmatprep.subr.mxu0 0.0
    %483 = vmatpush1.msra.mxu0 0.0
    %484 = vmatprep.subr.mxu0 0.0
    %485 = vmatpush1.msra.mxu0 0.0
    %486 = vmatprep.subr.mxu0 0.0
    %487 = vmatpush1.msra.mxu0 0.0
    %488 = vmatprep.subr.mxu0 0.0
    %489 = vmatpush1.msra.mxu0 0.0
    %490 = vmatprep.subr.mxu0 0.0
    %491 = vmatpush1.msra.mxu0 0.0
    %492 = vmatprep.subr.mxu0 0.0
    %493 = vmatpush1.msra.mxu0 0.0
    %494 = vmatprep.subr.mxu0 0.0
    %495 = vmatpush1.msra.mxu0 0.0
    %496 = vmatprep.subr.mxu0 0.0
    %497 = vmatpush1.msra.mxu0 0.0
    %498 = vmatprep.subr.mxu0 0.0
    %499 = vmatpush1.msra.mxu0 %v84
    %500 = vmatprep.subr.mxu0 0.0
    %501 = vmatpush1.msra.mxu0 %v83
    %502 = vmatprep.subr.mxu0 0.0
    %503 = vmatpush1.msra.mxu0 %v82
    %504 = vmatprep.subr.mxu0 0.0
    %505 = vmatpush1.msra.mxu0 %v81
    %506 = vmatprep.subr.mxu0 0.0
    %507 = vmatpush2.msra.mxu0 0.0
    %508 = vmatprep.subr.mxu0 0.0
    %509 = vmatpush2.msra.mxu0 0.0
    %510 = vmatprep.subr.mxu0 0.0
    %511 = vmatpush2.msra.mxu0 0.0
    %512 = vmatprep.subr.mxu0 0.0
    %513 = vmatpush2.msra.mxu0 0.0
    %514 = vmatprep.subr.mxu0 0.0
    %515 = vmatpush2.msra.mxu0 0.0
    %516 = vmatprep.subr.mxu0 0.0
    %517 = vmatpush2.msra.mxu0 0.0
    %518 = vmatprep.subr.mxu0 0.0
    %519 = vmatpush2.msra.mxu0 0.0
    %520 = vmatprep.subr.mxu0 0.0
    %521 = vmatpush2.msra.mxu0 0.0
    %522 = vmatprep.subr.mxu0 0.0
    %523 = vmatpush2.msra.mxu0 0.0
    %524 = vmatprep.subr.mxu0 0.0
    %525 = vmatpush2.msra.mxu0 0.0
    %526 = vmatprep.subr.mxu0 0.0
    %527 = vmatpush2.msra.mxu0 0.0
    %528 = vmatprep.subr.mxu0 0.0
    %529 = vmatpush2.msra.mxu0 0.0
    %530 = vmatprep.subr.mxu0 0.0
    %531 = vmatpush2.msra.mxu0 0.0
    %532 = vmatprep.subr.mxu0 0.0
    %533 = vmatpush2.msra.mxu0 0.0
    %534 = vmatprep.subr.mxu0 0.0
    %535 = vmatpush2.msra.mxu0 0.0
    %536 = vmatprep.subr.mxu0 0.0
    %537 = vmatpush2.msra.mxu0 0.0
    %538 = vmatprep.mubr.f32.mxu0 0.0
    %539 = vmatmul.mubr.f32.gmra.mxu0 %v472
    %v540 = vpop.f32.mrf.mxu0
    %v541 = vadd.f32 0.0, %v540
    %v542 = vpop.f32.mrf.mxu0
    %543 = vdwg.mxu0
    %v544 = vadd.f32 %v468, %v541
    %v545 = vxor.u32 %v544, 2147483648
    %v546 = vmul.f32 %v545, 1.442695
    %v547 = vpow.pop %v546
    %v548 = vadd.f32 %v547, 1.0
    %v549 = vrcp.pop %v548
    %v550 = vmul.f32 1.0, %v549
    %v551 = vtanh.pop %v544
    %v552 = vmul.f32 %v550, %v453
    %554 = vrot.lane.b32.xlu0 %v551, 64
    %v555 = vpop.permute.xlu0 %554
    %v557 = vmul.f32 %v550, %v555
    %559 = vrot.lane.b32.xlu0 %v557, 32
    %v560 = vpop.permute.xlu0 %559
    %v562 = vadd.f32 %v552, %v560
    %v563 = vtanh.pop %v562
    %565 = vrot.lane.b32.xlu0 %v563, 64
    %v566 = vpop.permute.xlu0 %565
    %v568 = vmul.f32 %v550, %v566
    %v569 = vstv %s466
    %vm570 = vcmp.lt.s32.totalorder %v569, %v80
    %v571 = vsel %vm570, 1, 0
    %572 = vset.pattern.permute.xlu0 0
    %573 = vperm.xlu0 %572, %v571
    %v574 = vpop.permute.xlu0 %573
    %vm575 = vcmp.eq.s32.totalorder %v574, 1
    %v576 = vsel %vm575, %v568, %v452
    %v577 = vsel %vm575, %v562, %v453
    %v578 = vsel %vm575, %v568, 0.0
    %p579 = scmp.lt.s32.totalorder %s466, 8
    %581 = vrot.lane.b32.xlu0 %v578, 32
    %v582 = vpop.permute.xlu0 %581
    %v584 = vmax.f32 %v464, %v582
    %s585 = scalar_select %p579, 1, 0
    %v586 = vstv %s585
    %vm587 = vcmp.eq.s32.totalorder %v586, 1
    %v588 = vsel %vm587, %v584, %v464
    %v589 = vadd.f32 %v465, %v582
    %s590 = sadd.s32 %s85, 4
    %s591 = scalar_lea.vmem [#allocation6], 32
    %v592 = vld [vmem:[%s591] sm:$0xff]
    %594 = vrot.lane.b32.xlu0 %v576, 32
    %v595 = vpop.permute.xlu0 %594
    %v596 = vsel %vm91, %v595, 0
    %598 = vmatprep.subr.mxu0 0.0
    %599 = vmatpush1.msra.mxu0 0.0
    %600 = vmatprep.subr.mxu0 0.0
    %601 = vmatpush1.msra.mxu0 0.0
    %602 = vmatprep.subr.mxu0 0.0
    %603 = vmatpush1.msra.mxu0 0.0
    %604 = vmatprep.subr.mxu0 0.0
    %605 = vmatpush1.msra.mxu0 0.0
    %606 = vmatprep.subr.mxu0 0.0
    %607 = vmatpush1.msra.mxu0 0.0
    %608 = vmatprep.subr.mxu0 0.0
    %609 = vmatpush1.msra.mxu0 0.0
    %610 = vmatprep.subr.mxu0 0.0
    %611 = vmatpush1.msra.mxu0 0.0
    %612 = vmatprep.subr.mxu0 0.0
    %613 = vmatpush1.msra.mxu0 0.0
    %614 = vmatprep.subr.mxu0 0.0
    %615 = vmatpush1.msra.mxu0 0.0
    %616 = vmatprep.subr.mxu0 0.0
    %617 = vmatpush1.msra.mxu0 0.0
    %618 = vmatprep.subr.mxu0 0.0
    %619 = vmatpush1.msra.mxu0 0.0
    %620 = vmatprep.subr.mxu0 0.0
    %621 = vmatpush1.msra.mxu0 0.0
    %622 = vmatprep.subr.mxu0 0.0
    %623 = vmatpush1.msra.mxu0 %v84
    %624 = vmatprep.subr.mxu0 0.0
    %625 = vmatpush1.msra.mxu0 %v83
    %626 = vmatprep.subr.mxu0 0.0
    %627 = vmatpush1.msra.mxu0 %v82
    %628 = vmatprep.subr.mxu0 0.0
    %629 = vmatpush1.msra.mxu0 %v81
    %630 = vmatprep.subr.mxu0 0.0
    %631 = vmatpush2.msra.mxu0 0.0
    %632 = vmatprep.subr.mxu0 0.0
    %633 = vmatpush2.msra.mxu0 0.0
    %634 = vmatprep.subr.mxu0 0.0
    %635 = vmatpush2.msra.mxu0 0.0
    %636 = vmatprep.subr.mxu0 0.0
    %637 = vmatpush2.msra.mxu0 0.0
    %638 = vmatprep.subr.mxu0 0.0
    %639 = vmatpush2.msra.mxu0 0.0
    %640 = vmatprep.subr.mxu0 0.0
    %641 = vmatpush2.msra.mxu0 0.0
    %642 = vmatprep.subr.mxu0 0.0
    %643 = vmatpush2.msra.mxu0 0.0
    %644 = vmatprep.subr.mxu0 0.0
    %645 = vmatpush2.msra.mxu0 0.0
    %646 = vmatprep.subr.mxu0 0.0
    %647 = vmatpush2.msra.mxu0 0.0
    %648 = vmatprep.subr.mxu0 0.0
    %649 = vmatpush2.msra.mxu0 0.0
    %650 = vmatprep.subr.mxu0 0.0
    %651 = vmatpush2.msra.mxu0 0.0
    %652 = vmatprep.subr.mxu0 0.0
    %653 = vmatpush2.msra.mxu0 0.0
    %654 = vmatprep.subr.mxu0 0.0
    %655 = vmatpush2.msra.mxu0 0.0
    %656 = vmatprep.subr.mxu0 0.0
    %657 = vmatpush2.msra.mxu0 0.0
    %658 = vmatprep.subr.mxu0 0.0
    %659 = vmatpush2.msra.mxu0 0.0
    %660 = vmatprep.subr.mxu0 0.0
    %661 = vmatpush2.msra.mxu0 0.0
    %662 = vmatprep.mubr.f32.mxu0 0.0
    %663 = vmatmul.mubr.f32.gmra.mxu0 %v596
    %v664 = vpop.f32.mrf.mxu0
    %v665 = vadd.f32 0.0, %v664
    %v666 = vpop.f32.mrf.mxu0
    %667 = vdwg.mxu0
    %v668 = vadd.f32 %v592, %v665
    %v669 = vxor.u32 %v668, 2147483648
    %v670 = vmul.f32 %v669, 1.442695
    %v671 = vpow.pop %v670
    %v672 = vadd.f32 %v671, 1.0
    %v673 = vrcp.pop %v672
    %v674 = vmul.f32 1.0, %v673
    %v675 = vtanh.pop %v668
    %v676 = vmul.f32 %v674, %v577
    %678 = vrot.lane.b32.xlu0 %v675, 64
    %v679 = vpop.permute.xlu0 %678
    %v681 = vmul.f32 %v674, %v679
    %683 = vrot.lane.b32.xlu0 %v681, 32
    %v684 = vpop.permute.xlu0 %683
    %v686 = vadd.f32 %v676, %v684
    %v687 = vtanh.pop %v686
    %689 = vrot.lane.b32.xlu0 %v687, 64
    %v690 = vpop.permute.xlu0 %689
    %v692 = vmul.f32 %v674, %v690
    %v693 = vstv %s590
    %vm694 = vcmp.lt.s32.totalorder %v693, %v80
    %v695 = vsel %vm694, 1, 0
    %696 = vset.pattern.permute.xlu0 0
    %697 = vperm.xlu0 %696, %v695
    %v698 = vpop.permute.xlu0 %697
    %vm699 = vcmp.eq.s32.totalorder %v698, 1
    %v700 = vsel %vm699, %v692, %v576
    %v701 = vsel %vm699, %v686, %v577
    %v702 = vsel %vm699, %v692, 0.0
    %p703 = scmp.lt.s32.totalorder %s590, 8
    %705 = vrot.lane.b32.xlu0 %v702, 32
    %v706 = vpop.permute.xlu0 %705
    %v708 = vmax.f32 %v588, %v706
    %s709 = scalar_select %p703, 1, 0
    %v710 = vstv %s709
    %vm711 = vcmp.eq.s32.totalorder %v710, 1
    %v712 = vsel %vm711, %v708, %v588
    %v713 = vadd.f32 %v589, %v706
    %s714 = sadd.s32 %s85, 5
    %s715 = scalar_lea.vmem [#allocation6], 40
    %v716 = vld [vmem:[%s715] sm:$0xff]
    %718 = vrot.lane.b32.xlu0 %v700, 32
    %v719 = vpop.permute.xlu0 %718
    %v720 = vsel %vm91, %v719, 0
    %722 = vmatprep.subr.mxu0 0.0
    %723 = vmatpush1.msra.mxu0 0.0
    %724 = vmatprep.subr.mxu0 0.0
    %725 = vmatpush1.msra.mxu0 0.0
    %726 = vmatprep.subr.mxu0 0.0
    %727 = vmatpush1.msra.mxu0 0.0
    %728 = vmatprep.subr.mxu0 0.0
    %729 = vmatpush1.msra.mxu0 0.0
    %730 = vmatprep.subr.mxu0 0.0
    %731 = vmatpush1.msra.mxu0 0.0
    %732 = vmatprep.subr.mxu0 0.0
    %733 = vmatpush1.msra.mxu0 0.0
    %734 = vmatprep.subr.mxu0 0.0
    %735 = vmatpush1.msra.mxu0 0.0
    %736 = vmatprep.subr.mxu0 0.0
    %737 = vmatpush1.msra.mxu0 0.0
    %738 = vmatprep.subr.mxu0 0.0
    %739 = vmatpush1.msra.mxu0 0.0
    %740 = vmatprep.subr.mxu0 0.0
    %741 = vmatpush1.msra.mxu0 0.0
    %742 = vmatprep.subr.mxu0 0.0
    %743 = vmatpush1.msra.mxu0 0.0
    %744 = vmatprep.subr.mxu0 0.0
    %745 = vmatpush1.msra.mxu0 0.0
    %746 = vmatprep.subr.mxu0 0.0
    %747 = vmatpush1.msra.mxu0 %v84
    %748 = vmatprep.subr.mxu0 0.0
    %749 = vmatpush1.msra.mxu0 %v83
    %750 = vmatprep.subr.mxu0 0.0
    %751 = vmatpush1.msra.mxu0 %v82
    %752 = vmatprep.subr.mxu0 0.0
    %753 = vmatpush1.msra.mxu0 %v81
    %754 = vmatprep.subr.mxu0 0.0
    %755 = vmatpush2.msra.mxu0 0.0
    %756 = vmatprep.subr.mxu0 0.0
    %757 = vmatpush2.msra.mxu0 0.0
    %758 = vmatprep.subr.mxu0 0.0
    %759 = vmatpush2.msra.mxu0 0.0
    %760 = vmatprep.subr.mxu0 0.0
    %761 = vmatpush2.msra.mxu0 0.0
    %762 = vmatprep.subr.mxu0 0.0
    %763 = vmatpush2.msra.mxu0 0.0
    %764 = vmatprep.subr.mxu0 0.0
    %765 = vmatpush2.msra.mxu0 0.0
    %766 = vmatprep.subr.mxu0 0.0
    %767 = vmatpush2.msra.mxu0 0.0
    %768 = vmatprep.subr.mxu0 0.0
    %769 = vmatpush2.msra.mxu0 0.0
    %770 = vmatprep.subr.mxu0 0.0
    %771 = vmatpush2.msra.mxu0 0.0
    %772 = vmatprep.subr.mxu0 0.0
    %773 = vmatpush2.msra.mxu0 0.0
    %774 = vmatprep.subr.mxu0 0.0
    %775 = vmatpush2.msra.mxu0 0.0
    %776 = vmatprep.subr.mxu0 0.0
    %777 = vmatpush2.msra.mxu0 0.0
    %778 = vmatprep.subr.mxu0 0.0
    %779 = vmatpush2.msra.mxu0 0.0
    %780 = vmatprep.subr.mxu0 0.0
    %781 = vmatpush2.msra.mxu0 0.0
    %782 = vmatprep.subr.mxu0 0.0
    %783 = vmatpush2.msra.mxu0 0.0
    %784 = vmatprep.subr.mxu0 0.0
    %785 = vmatpush2.msra.mxu0 0.0
    %786 = vmatprep.mubr.f32.mxu0 0.0
    %787 = vmatmul.mubr.f32.gmra.mxu0 %v720
    %v788 = vpop.f32.mrf.mxu0
    %v789 = vadd.f32 0.0, %v788
    %v790 = vpop.f32.mrf.mxu0
    %791 = vdwg.mxu0
    %v792 = vadd.f32 %v716, %v789
    %v793 = vxor.u32 %v792, 2147483648
    %v794 = vmul.f32 %v793, 1.442695
    %v795 = vpow.pop %v794
    %v796 = vadd.f32 %v795, 1.0
    %v797 = vrcp.pop %v796
    %v798 = vmul.f32 1.0, %v797
    %v799 = vtanh.pop %v792
    %v800 = vmul.f32 %v798, %v701
    %802 = vrot.lane.b32.xlu0 %v799, 64
    %v803 = vpop.permute.xlu0 %802
    %v805 = vmul.f32 %v798, %v803
    %807 = vrot.lane.b32.xlu0 %v805, 32
    %v808 = vpop.permute.xlu0 %807
    %v810 = vadd.f32 %v800, %v808
    %v811 = vtanh.pop %v810
    %813 = vrot.lane.b32.xlu0 %v811, 64
    %v814 = vpop.permute.xlu0 %813
    %v816 = vmul.f32 %v798, %v814
    %v817 = vstv %s714
    %vm818 = vcmp.lt.s32.totalorder %v817, %v80
    %v819 = vsel %vm818, 1, 0
    %820 = vset.pattern.permute.xlu0 0
    %821 = vperm.xlu0 %820, %v819
    %v822 = vpop.permute.xlu0 %821
    %vm823 = vcmp.eq.s32.totalorder %v822, 1
    %v824 = vsel %vm823, %v816, %v700
    %v825 = vsel %vm823, %v810, %v701
    %v826 = vsel %vm823, %v816, 0.0
    %p827 = scmp.lt.s32.totalorder %s714, 8
    %829 = vrot.lane.b32.xlu0 %v826, 32
    %v830 = vpop.permute.xlu0 %829
    %v832 = vmax.f32 %v712, %v830
    %s833 = scalar_select %p827, 1, 0
    %v834 = vstv %s833
    %vm835 = vcmp.eq.s32.totalorder %v834, 1
    %v836 = vsel %vm835, %v832, %v712
    %v837 = vadd.f32 %v713, %v830
    %s838 = sadd.s32 %s85, 6
    %s839 = scalar_lea.vmem [#allocation6], 48
    %v840 = vld [vmem:[%s839] sm:$0xff]
    %842 = vrot.lane.b32.xlu0 %v824, 32
    %v843 = vpop.permute.xlu0 %842
    %v844 = vsel %vm91, %v843, 0
    %846 = vmatprep.subr.mxu0 0.0
    %847 = vmatpush1.msra.mxu0 0.0
    %848 = vmatprep.subr.mxu0 0.0
    %849 = vmatpush1.msra.mxu0 0.0
    %850 = vmatprep.subr.mxu0 0.0
    %851 = vmatpush1.msra.mxu0 0.0
    %852 = vmatprep.subr.mxu0 0.0
    %853 = vmatpush1.msra.mxu0 0.0
    %854 = vmatprep.subr.mxu0 0.0
    %855 = vmatpush1.msra.mxu0 0.0
    %856 = vmatprep.subr.mxu0 0.0
    %857 = vmatpush1.msra.mxu0 0.0
    %858 = vmatprep.subr.mxu0 0.0
    %859 = vmatpush1.msra.mxu0 0.0
    %860 = vmatprep.subr.mxu0 0.0
    %861 = vmatpush1.msra.mxu0 0.0
    %862 = vmatprep.subr.mxu0 0.0
    %863 = vmatpush1.msra.mxu0 0.0
    %864 = vmatprep.subr.mxu0 0.0
    %865 = vmatpush1.msra.mxu0 0.0
    %866 = vmatprep.subr.mxu0 0.0
    %867 = vmatpush1.msra.mxu0 0.0
    %868 = vmatprep.subr.mxu0 0.0
    %869 = vmatpush1.msra.mxu0 0.0
    %870 = vmatprep.subr.mxu0 0.0
    %871 = vmatpush1.msra.mxu0 %v84
    %872 = vmatprep.subr.mxu0 0.0
    %873 = vmatpush1.msra.mxu0 %v83
    %874 = vmatprep.subr.mxu0 0.0
    %875 = vmatpush1.msra.mxu0 %v82
    %876 = vmatprep.subr.mxu0 0.0
    %877 = vmatpush1.msra.mxu0 %v81
    %878 = vmatprep.subr.mxu0 0.0
    %879 = vmatpush2.msra.mxu0 0.0
    %880 = vmatprep.subr.mxu0 0.0
    %881 = vmatpush2.msra.mxu0 0.0
    %882 = vmatprep.subr.mxu0 0.0
    %883 = vmatpush2.msra.mxu0 0.0
    %884 = vmatprep.subr.mxu0 0.0
    %885 = vmatpush2.msra.mxu0 0.0
    %886 = vmatprep.subr.mxu0 0.0
    %887 = vmatpush2.msra.mxu0 0.0
    %888 = vmatprep.subr.mxu0 0.0
    %889 = vmatpush2.msra.mxu0 0.0
    %890 = vmatprep.subr.mxu0 0.0
    %891 = vmatpush2.msra.mxu0 0.0
    %892 = vmatprep.subr.mxu0 0.0
    %893 = vmatpush2.msra.mxu0 0.0
    %894 = vmatprep.subr.mxu0 0.0
    %895 = vmatpush2.msra.mxu0 0.0
    %896 = vmatprep.subr.mxu0 0.0
    %897 = vmatpush2.msra.mxu0 0.0
    %898 = vmatprep.subr.mxu0 0.0
    %899 = vmatpush2.msra.mxu0 0.0
    %900 = vmatprep.subr.mxu0 0.0
    %901 = vmatpush2.msra.mxu0 0.0
    %902 = vmatprep.subr.mxu0 0.0
    %903 = vmatpush2.msra.mxu0 0.0
    %904 = vmatprep.subr.mxu0 0.0
    %905 = vmatpush2.msra.mxu0 0.0
    %906 = vmatprep.subr.mxu0 0.0
    %907 = vmatpush2.msra.mxu0 0.0
    %908 = vmatprep.subr.mxu0 0.0
    %909 = vmatpush2.msra.mxu0 0.0
    %910 = vmatprep.mubr.f32.mxu0 0.0
    %911 = vmatmul.mubr.f32.gmra.mxu0 %v844
    %v912 = vpop.f32.mrf.mxu0
    %v913 = vadd.f32 0.0, %v912
    %v914 = vpop.f32.mrf.mxu0
    %915 = vdwg.mxu0
    %v916 = vadd.f32 %v840, %v913
    %v917 = vxor.u32 %v916, 2147483648
    %v918 = vmul.f32 %v917, 1.442695
    %v919 = vpow.pop %v918
    %v920 = vadd.f32 %v919, 1.0
    %v921 = vrcp.pop %v920
    %v922 = vmul.f32 1.0, %v921
    %v923 = vtanh.pop %v916
    %v924 = vmul.f32 %v922, %v825
    %926 = vrot.lane.b32.xlu0 %v923, 64
    %v927 = vpop.permute.xlu0 %926
    %v929 = vmul.f32 %v922, %v927
    %931 = vrot.lane.b32.xlu0 %v929, 32
    %v932 = vpop.permute.xlu0 %931
    %v934 = vadd.f32 %v924, %v932
    %v935 = vtanh.pop %v934
    %937 = vrot.lane.b32.xlu0 %v935, 64
    %v938 = vpop.permute.xlu0 %937
    %v940 = vmul.f32 %v922, %v938
    %v941 = vstv %s838
    %vm942 = vcmp.lt.s32.totalorder %v941, %v80
    %v943 = vsel %vm942, 1, 0
    %944 = vset.pattern.permute.xlu0 0
    %945 = vperm.xlu0 %944, %v943
    %v946 = vpop.permute.xlu0 %945
    %vm947 = vcmp.eq.s32.totalorder %v946, 1
    %v948 = vsel %vm947, %v940, %v824
    %v949 = vsel %vm947, %v934, %v825
    %v950 = vsel %vm947, %v940, 0.0
    %p951 = scmp.lt.s32.totalorder %s838, 8
    %953 = vrot.lane.b32.xlu0 %v950, 32
    %v954 = vpop.permute.xlu0 %953
    %v956 = vmax.f32 %v836, %v954
    %s957 = scalar_select %p951, 1, 0
    %v958 = vstv %s957
    %vm959 = vcmp.eq.s32.totalorder %v958, 1
    %v960 = vsel %vm959, %v956, %v836
    %v961 = vadd.f32 %v837, %v954
    %s962 = sadd.s32 %s85, 7
    %s963 = scalar_lea.vmem [#allocation6], 56
    %v964 = vld [vmem:[%s963] sm:$0xff]
    %966 = vrot.lane.b32.xlu0 %v948, 32
    %v967 = vpop.permute.xlu0 %966
    %v968 = vsel %vm91, %v967, 0
    %970 = vmatprep.subr.mxu0 0.0
    %971 = vmatpush1.msra.mxu0 0.0
    %972 = vmatprep.subr.mxu0 0.0
    %973 = vmatpush1.msra.mxu0 0.0
    %974 = vmatprep.subr.mxu0 0.0
    %975 = vmatpush1.msra.mxu0 0.0
    %976 = vmatprep.subr.mxu0 0.0
    %977 = vmatpush1.msra.mxu0 0.0
    %978 = vmatprep.subr.mxu0 0.0
    %979 = vmatpush1.msra.mxu0 0.0
    %980 = vmatprep.subr.mxu0 0.0
    %981 = vmatpush1.msra.mxu0 0.0
    %982 = vmatprep.subr.mxu0 0.0
    %983 = vmatpush1.msra.mxu0 0.0
    %984 = vmatprep.subr.mxu0 0.0
    %985 = vmatpush1.msra.mxu0 0.0
    %986 = vmatprep.subr.mxu0 0.0
    %987 = vmatpush1.msra.mxu0 0.0
    %988 = vmatprep.subr.mxu0 0.0
    %989 = vmatpush1.msra.mxu0 0.0
    %990 = vmatprep.subr.mxu0 0.0
    %991 = vmatpush1.msra.mxu0 0.0
    %992 = vmatprep.subr.mxu0 0.0
    %993 = vmatpush1.msra.mxu0 0.0
    %994 = vmatprep.subr.mxu0 0.0
    %995 = vmatpush1.msra.mxu0 %v84
    %996 = vmatprep.subr.mxu0 0.0
    %997 = vmatpush1.msra.mxu0 %v83
    %998 = vmatprep.subr.mxu0 0.0
    %999 = vmatpush1.msra.mxu0 %v82
    %1000 = vmatprep.subr.mxu0 0.0
    %1001 = vmatpush1.msra.mxu0 %v81
    %1002 = vmatprep.subr.mxu0 0.0
    %1003 = vmatpush2.msra.mxu0 0.0
    %1004 = vmatprep.subr.mxu0 0.0
    %1005 = vmatpush2.msra.mxu0 0.0
    %1006 = vmatprep.subr.mxu0 0.0
    %1007 = vmatpush2.msra.mxu0 0.0
    %1008 = vmatprep.subr.mxu0 0.0
    %1009 = vmatpush2.msra.mxu0 0.0
    %1010 = vmatprep.subr.mxu0 0.0
    %1011 = vmatpush2.msra.mxu0 0.0
    %1012 = vmatprep.subr.mxu0 0.0
    %1013 = vmatpush2.msra.mxu0 0.0
    %1014 = vmatprep.subr.mxu0 0.0
    %1015 = vmatpush2.msra.mxu0 0.0
    %1016 = vmatprep.subr.mxu0 0.0
    %1017 = vmatpush2.msra.mxu0 0.0
    %1018 = vmatprep.subr.mxu0 0.0
    %1019 = vmatpush2.msra.mxu0 0.0
    %1020 = vmatprep.subr.mxu0 0.0
    %1021 = vmatpush2.msra.mxu0 0.0
    %1022 = vmatprep.subr.mxu0 0.0
    %1023 = vmatpush2.msra.mxu0 0.0
    %1024 = vmatprep.subr.mxu0 0.0
    %1025 = vmatpush2.msra.mxu0 0.0
    %1026 = vmatprep.subr.mxu0 0.0
    %1027 = vmatpush2.msra.mxu0 0.0
    %1028 = vmatprep.subr.mxu0 0.0
    %1029 = vmatpush2.msra.mxu0 0.0
    %1030 = vmatprep.subr.mxu0 0.0
    %1031 = vmatpush2.msra.mxu0 0.0
    %1032 = vmatprep.subr.mxu0 0.0
    %1033 = vmatpush2.msra.mxu0 0.0
    %1034 = vmatprep.mubr.f32.mxu0 0.0
    %1035 = vmatmul.mubr.f32.gmra.mxu0 %v968
    %v1036 = vpop.f32.mrf.mxu0
    %v1037 = vadd.f32 0.0, %v1036
    %v1038 = vpop.f32.mrf.mxu0
    %1039 = vdwg.mxu0
    %v1040 = vadd.f32 %v964, %v1037
    %v1041 = vxor.u32 %v1040, 2147483648
    %v1042 = vmul.f32 %v1041, 1.442695
    %v1043 = vpow.pop %v1042
    %v1044 = vadd.f32 %v1043, 1.0
    %v1045 = vrcp.pop %v1044
    %v1046 = vmul.f32 1.0, %v1045
    %v1047 = vtanh.pop %v1040
    %v1048 = vmul.f32 %v1046, %v949
    %1050 = vrot.lane.b32.xlu0 %v1047, 64
    %v1051 = vpop.permute.xlu0 %1050
    %v1053 = vmul.f32 %v1046, %v1051
    %1055 = vrot.lane.b32.xlu0 %v1053, 32
    %v1056 = vpop.permute.xlu0 %1055
    %v1058 = vadd.f32 %v1048, %v1056
    %v1059 = vtanh.pop %v1058
    %1061 = vrot.lane.b32.xlu0 %v1059, 64
    %v1062 = vpop.permute.xlu0 %1061
    %v1064 = vmul.f32 %v1046, %v1062
    %v1065 = vstv %s962
    %vm1066 = vcmp.lt.s32.totalorder %v1065, %v80
    %v1067 = vsel %vm1066, 1, 0
    %1068 = vset.pattern.permute.xlu0 0
    %1069 = vperm.xlu0 %1068, %v1067
    %v1070 = vpop.permute.xlu0 %1069
    %vm1071 = vcmp.eq.s32.totalorder %v1070, 1
    %v1072 = vsel %vm1071, %v1064, %v948
    %v1073 = vsel %vm1071, %v1058, %v949
    %v1074 = vsel %vm1071, %v1064, 0.0
    %p1075 = scmp.lt.s32.totalorder %s962, 8
    %1077 = vrot.lane.b32.xlu0 %v1074, 32
    %v1078 = vpop.permute.xlu0 %1077
    %v1080 = vmax.f32 %v960, %v1078
    %s1081 = scalar_select %p1075, 1, 0
    %v1082 = vstv %s1081
    %vm1083 = vcmp.eq.s32.totalorder %v1082, 1
    %v1084 = vsel %vm1083, %v1080, %v960
    %v1085 = vadd.f32 %v961, %v1078
    %1087 = vrot.lane.b32.xlu0 %v1072, 32
    %v1088 = vpop.permute.xlu0 %1087
    %1090 = vst.msk [vmem:[#allocation2] sm:$0xff] %vm91, %v1088
    %1092 = vrot.lane.b32.xlu0 %v1073, 96
    %v1093 = vpop.permute.xlu0 %1092
    %1095 = vst.msk [vmem:[#allocation3] sm:$0xff] %vm91, %v1093
    %1096 = vst.msk [vmem:[#allocation4] sm:$0xff] %vm91, %v1084
    %1097 = vst.msk [vmem:[#allocation5] sm:$0xff] %vm91, %v1085
    // Predicated region
    $region50: #{tpu_custom_call.1} parent=1 // pred_check
      %p1098 = pneg %p71
    $region51: #{tpu_custom_call.1} parent=1 // pred_check_branch
      %1100 = sbr.rel (%p1098) target = $region53
    $region52: #{tpu_custom_call.1} parent=1 // pred_region
      %v1101 = vmul.f32 %v1085, 0.125
      %v1102 = vld [vmem:[#allocation9] sm:$0xff]
      %v1103 = vld [vmem:[#allocation9 + $0x8] sm:$0xff]
      %v1104 = vld [vmem:[#allocation9 + $0x10] sm:$0xff]
      %v1105 = vld [vmem:[#allocation9 + $0x18] sm:$0xff]
      %v1106 = vld [vmem:[#allocation11] sm:$0xff]
      %v1107 = vld [vmem:[#allocation11 + $0x8] sm:$0xff]
      %v1108 = vld [vmem:[#allocation11 + $0x10] sm:$0xff]
      %v1109 = vld [vmem:[#allocation11 + $0x18] sm:$0xff]
      %v1111 = vsel %vm91, %v1101, 0
      %1113 = vmatprep.subr.mxu0 0.0
      %1114 = vmatpush1.msra.mxu0 0.0
      %1115 = vmatprep.subr.mxu0 0.0
      %1116 = vmatpush1.msra.mxu0 0.0
      %1117 = vmatprep.subr.mxu0 0.0
      %1118 = vmatpush1.msra.mxu0 0.0
      %1119 = vmatprep.subr.mxu0 0.0
      %1120 = vmatpush1.msra.mxu0 0.0
      %1121 = vmatprep.subr.mxu0 0.0
      %1122 = vmatpush1.msra.mxu0 0.0
      %1123 = vmatprep.subr.mxu0 0.0
      %1124 = vmatpush1.msra.mxu0 0.0
      %1125 = vmatprep.subr.mxu0 0.0
      %1126 = vmatpush1.msra.mxu0 0.0
      %1127 = vmatprep.subr.mxu0 0.0
      %1128 = vmatpush1.msra.mxu0 0.0
      %1129 = vmatprep.subr.mxu0 0.0
      %1130 = vmatpush1.msra.mxu0 0.0
      %1131 = vmatprep.subr.mxu0 0.0
      %1132 = vmatpush1.msra.mxu0 0.0
      %1133 = vmatprep.subr.mxu0 0.0
      %1134 = vmatpush1.msra.mxu0 0.0
      %1135 = vmatprep.subr.mxu0 0.0
      %1136 = vmatpush1.msra.mxu0 0.0
      %1137 = vmatprep.subr.mxu0 0.0
      %1138 = vmatpush1.msra.mxu0 %v1109
      %1139 = vmatprep.subr.mxu0 0.0
      %1140 = vmatpush1.msra.mxu0 %v1108
      %1141 = vmatprep.subr.mxu0 0.0
      %1142 = vmatpush1.msra.mxu0 %v1107
      %1143 = vmatprep.subr.mxu0 0.0
      %1144 = vmatpush1.msra.mxu0 %v1106
      %1145 = vmatprep.subr.mxu0 0.0
      %1146 = vmatpush2.msra.mxu0 0.0
      %1147 = vmatprep.subr.mxu0 0.0
      %1148 = vmatpush2.msra.mxu0 0.0
      %1149 = vmatprep.subr.mxu0 0.0
      %1150 = vmatpush2.msra.mxu0 0.0
      %1151 = vmatprep.subr.mxu0 0.0
      %1152 = vmatpush2.msra.mxu0 0.0
      %1153 = vmatprep.subr.mxu0 0.0
      %1154 = vmatpush2.msra.mxu0 0.0
      %1155 = vmatprep.subr.mxu0 0.0
      %1156 = vmatpush2.msra.mxu0 0.0
      %1157 = vmatprep.subr.mxu0 0.0
      %1158 = vmatpush2.msra.mxu0 0.0
      %1159 = vmatprep.subr.mxu0 0.0
      %1160 = vmatpush2.msra.mxu0 0.0
      %1161 = vmatprep.subr.mxu0 0.0
      %1162 = vmatpush2.msra.mxu0 0.0
      %1163 = vmatprep.subr.mxu0 0.0
      %1164 = vmatpush2.msra.mxu0 0.0
      %1165 = vmatprep.subr.mxu0 0.0
      %1166 = vmatpush2.msra.mxu0 0.0
      %1167 = vmatprep.subr.mxu0 0.0
      %1168 = vmatpush2.msra.mxu0 0.0
      %1169 = vmatprep.subr.mxu0 0.0
      %1170 = vmatpush2.msra.mxu0 0.0
      %1171 = vmatprep.subr.mxu0 0.0
      %1172 = vmatpush2.msra.mxu0 0.0
      %1173 = vmatprep.subr.mxu0 0.0
      %1174 = vmatpush2.msra.mxu0 0.0
      %1175 = vmatprep.subr.mxu0 0.0
      %1176 = vmatpush2.msra.mxu0 0.0
      %1177 = vmatprep.mubr.f32.mxu0 0.0
      %1178 = vmatmul.mubr.f32.gmra.mxu0 %v1111
      %v1179 = vpop.f32.mrf.mxu0
      %v1180 = vadd.f32 0.0, %v1179
      %v1181 = vpop.f32.mrf.mxu0
      %1182 = vdwg.mxu0
      %v1184 = vsel %vm91, %v1084, 0
      %1186 = vmatprep.subr.mxu0 0.0
      %1187 = vmatpush1.msra.mxu0 0.0
      %1188 = vmatprep.subr.mxu0 0.0
      %1189 = vmatpush1.msra.mxu0 0.0
      %1190 = vmatprep.subr.mxu0 0.0
      %1191 = vmatpush1.msra.mxu0 0.0
      %1192 = vmatprep.subr.mxu0 0.0
      %1193 = vmatpush1.msra.mxu0 0.0
      %1194 = vmatprep.subr.mxu0 0.0
      %1195 = vmatpush1.msra.mxu0 0.0
      %1196 = vmatprep.subr.mxu0 0.0
      %1197 = vmatpush1.msra.mxu0 0.0
      %1198 = vmatprep.subr.mxu0 0.0
      %1199 = vmatpush1.msra.mxu0 0.0
      %1200 = vmatprep.subr.mxu0 0.0
      %1201 = vmatpush1.msra.mxu0 0.0
      %1202 = vmatprep.subr.mxu0 0.0
      %1203 = vmatpush1.msra.mxu0 0.0
      %1204 = vmatprep.subr.mxu0 0.0
      %1205 = vmatpush1.msra.mxu0 0.0
      %1206 = vmatprep.subr.mxu0 0.0
      %1207 = vmatpush1.msra.mxu0 0.0
      %1208 = vmatprep.subr.mxu0 0.0
      %1209 = vmatpush1.msra.mxu0 0.0
      %1210 = vmatprep.subr.mxu0 0.0
      %1211 = vmatpush1.msra.mxu0 %v1105
      %1212 = vmatprep.subr.mxu0 0.0
      %1213 = vmatpush1.msra.mxu0 %v1104
      %1214 = vmatprep.subr.mxu0 0.0
      %1215 = vmatpush1.msra.mxu0 %v1103
      %1216 = vmatprep.subr.mxu0 0.0
      %1217 = vmatpush1.msra.mxu0 %v1102
      %1218 = vmatprep.subr.mxu0 0.0
      %1219 = vmatpush2.msra.mxu0 0.0
      %1220 = vmatprep.subr.mxu0 0.0
      %1221 = vmatpush2.msra.mxu0 0.0
      %1222 = vmatprep.subr.mxu0 0.0
      %1223 = vmatpush2.msra.mxu0 0.0
      %1224 = vmatprep.subr.mxu0 0.0
      %1225 = vmatpush2.msra.mxu0 0.0
      %1226 = vmatprep.subr.mxu0 0.0
      %1227 = vmatpush2.msra.mxu0 0.0
      %1228 = vmatprep.subr.mxu0 0.0
      %1229 = vmatpush2.msra.mxu0 0.0
      %1230 = vmatprep.subr.mxu0 0.0
      %1231 = vmatpush2.msra.mxu0 0.0
      %1232 = vmatprep.subr.mxu0 0.0
      %1233 = vmatpush2.msra.mxu0 0.0
      %1234 = vmatprep.subr.mxu0 0.0
      %1235 = vmatpush2.msra.mxu0 0.0
      %1236 = vmatprep.subr.mxu0 0.0
      %1237 = vmatpush2.msra.mxu0 0.0
      %1238 = vmatprep.subr.mxu0 0.0
      %1239 = vmatpush2.msra.mxu0 0.0
      %1240 = vmatprep.subr.mxu0 0.0
      %1241 = vmatpush2.msra.mxu0 0.0
      %1242 = vmatprep.subr.mxu0 0.0
      %1243 = vmatpush2.msra.mxu0 0.0
      %1244 = vmatprep.subr.mxu0 0.0
      %1245 = vmatpush2.msra.mxu0 0.0
      %1246 = vmatprep.subr.mxu0 0.0
      %1247 = vmatpush2.msra.mxu0 0.0
      %1248 = vmatprep.subr.mxu0 0.0
      %1249 = vmatpush2.msra.mxu0 0.0
      %1250 = vmatprep.mubr.f32.mxu0 0.0
      %1251 = vmatmul.mubr.f32.gmra.mxu0 %v1184
      %v1252 = vpop.f32.mrf.mxu0
      %v1253 = vadd.f32 %v1180, %v1252
      %v1254 = vpop.f32.mrf.mxu0
      %1255 = vdwg.mxu0
      %v1256 = vld [vmem:[%s5] sm:$0x1]
      %v1258 = vlaneseq
      %v1259 = vshrl.u32 %v1258, 7
      %v1260 = vsub.s32 0, %v1259
      %v1261 = vrot.slane %v1256, %v1260
      %v1263 = vadd.f32 %v1253, %v1261
      %v1264 = vmax.f32 %v1263, 0.0
      %v1265 = vld [vmem:[%s6] sm:$0xff]
      %v1266 = vld [vmem:[%s6 + $0x8] sm:$0xff]
      %v1267 = vld [vmem:[%s6 + $0x10] sm:$0xff]
      %v1268 = vld [vmem:[%s6 + $0x18] sm:$0xff]
      %v1269 = vld [vmem:[%s7] sm:$0x1]
      %v1271 = vlaneseq
      %v1272 = vshrl.u32 %v1271, 7
      %v1273 = vsub.s32 0, %v1272
      %v1274 = vrot.slane %v1269, %v1273
      %v1277 = vsel %vm91, %v1264, 0
      %1279 = vmatprep.subr.mxu0 0.0
      %1280 = vmatpush1.msra.mxu0 0.0
      %1281 = vmatprep.subr.mxu0 0.0
      %1282 = vmatpush1.msra.mxu0 0.0
      %1283 = vmatprep.subr.mxu0 0.0
      %1284 = vmatpush1.msra.mxu0 0.0
      %1285 = vmatprep.subr.mxu0 0.0
      %1286 = vmatpush1.msra.mxu0 0.0
      %1287 = vmatprep.subr.mxu0 0.0
      %1288 = vmatpush1.msra.mxu0 0.0
      %1289 = vmatprep.subr.mxu0 0.0
      %1290 = vmatpush1.msra.mxu0 0.0
      %1291 = vmatprep.subr.mxu0 0.0
      %1292 = vmatpush1.msra.mxu0 0.0
      %1293 = vmatprep.subr.mxu0 0.0
      %1294 = vmatpush1.msra.mxu0 0.0
      %1295 = vmatprep.subr.mxu0 0.0
      %1296 = vmatpush1.msra.mxu0 0.0
      %1297 = vmatprep.subr.mxu0 0.0
      %1298 = vmatpush1.msra.mxu0 0.0
      %1299 = vmatprep.subr.mxu0 0.0
      %1300 = vmatpush1.msra.mxu0 0.0
      %1301 = vmatprep.subr.mxu0 0.0
      %1302 = vmatpush1.msra.mxu0 0.0
      %1303 = vmatprep.subr.mxu0 0.0
      %1304 = vmatpush1.msra.mxu0 %v1268
      %1305 = vmatprep.subr.mxu0 0.0
      %1306 = vmatpush1.msra.mxu0 %v1267
      %1307 = vmatprep.subr.mxu0 0.0
      %1308 = vmatpush1.msra.mxu0 %v1266
      %1309 = vmatprep.subr.mxu0 0.0
      %1310 = vmatpush1.msra.mxu0 %v1265
      %1311 = vmatprep.subr.mxu0 0.0
      %1312 = vmatpush2.msra.mxu0 0.0
      %1313 = vmatprep.subr.mxu0 0.0
      %1314 = vmatpush2.msra.mxu0 0.0
      %1315 = vmatprep.subr.mxu0 0.0
      %1316 = vmatpush2.msra.mxu0 0.0
      %1317 = vmatprep.subr.mxu0 0.0
      %1318 = vmatpush2.msra.mxu0 0.0
      %1319 = vmatprep.subr.mxu0 0.0
      %1320 = vmatpush2.msra.mxu0 0.0
      %1321 = vmatprep.subr.mxu0 0.0
      %1322 = vmatpush2.msra.mxu0 0.0
      %1323 = vmatprep.subr.mxu0 0.0
      %1324 = vmatpush2.msra.mxu0 0.0
      %1325 = vmatprep.subr.mxu0 0.0
      %1326 = vmatpush2.msra.mxu0 0.0
      %1327 = vmatprep.subr.mxu0 0.0
      %1328 = vmatpush2.msra.mxu0 0.0
      %1329 = vmatprep.subr.mxu0 0.0
      %1330 = vmatpush2.msra.mxu0 0.0
      %1331 = vmatprep.subr.mxu0 0.0
      %1332 = vmatpush2.msra.mxu0 0.0
      %1333 = vmatprep.subr.mxu0 0.0
      %1334 = vmatpush2.msra.mxu0 0.0
      %1335 = vmatprep.subr.mxu0 0.0
      %1336 = vmatpush2.msra.mxu0 0.0
      %1337 = vmatprep.subr.mxu0 0.0
      %1338 = vmatpush2.msra.mxu0 0.0
      %1339 = vmatprep.subr.mxu0 0.0
      %1340 = vmatpush2.msra.mxu0 0.0
      %1341 = vmatprep.subr.mxu0 0.0
      %1342 = vmatpush2.msra.mxu0 0.0
      %1343 = vmatprep.mubr.f32.mxu0 0.0
      %1344 = vmatmul.mubr.f32.gmra.mxu0 %v1277
      %v1345 = vpop.f32.mrf.mxu0
      %v1346 = vadd.f32 %v1274, %v1345
      %v1347 = vpop.f32.mrf.mxu0
      %1348 = vdwg.mxu0
      %vm1349 = vcmask 64512
      %1350 = vst.msk [vmem:[#allocation12] sm:$0xff] %vm1349, %v1346
    $region53: #{tpu_custom_call.1} parent=1 // pred_fallthru
      _
    // Predicated region
    $region54: #{tpu_custom_call.1} parent=1 // pred_check
      _
    $region55: #{tpu_custom_call.1} parent=1 // pred_check_branch
      %1352 = sbr.rel (0) target = $region57
    $region56: #{tpu_custom_call.1} parent=1 // pred_region
      %s1354 = ssub.s32 128, 128
      %1355 = vsyncadd [#allocation8], %s1354
      %s1357 = sshll.u32 [#allocation12], 4
      %s1358 = int_to_ptr.vmem [resolvable:$true] %s1357
      %1360 = dma.vmem_to_hbm [thread:$0]  %s1358, 128, %s8, [#allocation8]
    $region57: #{tpu_custom_call.1} parent=1 // pred_fallthru
      _
    // Predicated region
    $region58: #{tpu_custom_call.1} parent=1 // pred_check
      _
    $region59: #{tpu_custom_call.1} parent=1 // pred_check_branch
      %1362 = sbr.rel (0) target = $region61
    $region60: #{tpu_custom_call.1} parent=1 // pred_region
      %1363 = dma.done [#allocation8], 128
    $region61: #{tpu_custom_call.1} parent=1 // pred_fallthru
      _
    %1364 = vsyncpa [#allocation7], 1
    %1365 = vsyncpa [#allocation10], 1
    %1366 = vsyncpa [#allocation8], 1

</llo_original>
